<compile_context>
chip_gen: v7x
topology: tpu7x:2x2x1
jax: 0.10.0
libtpu: 0.0.40
codegen_flags: <defaults>
</compile_context>

<pallas_src>
import functools

import jax
import jax.numpy as jnp
from jax.experimental import pallas as pl
from jax.experimental.pallas import tpu as pltpu


def _mha_kernel(x_ref, wqkv_ref, bqkv_ref, wo_ref, bo_ref, o_ref, *,
                num_heads, head_dim):
    """One batch element per grid step.

    x_ref    : (S, E)      bf16  input slab (batch dim squeezed by BlockSpec)
    wqkv_ref : (E, 3E)     bf16  fused, pre-transposed q|k|v weight (scale in q cols)
    bqkv_ref : (1, 3E)     f32   fused bias (scale folded into q part)
    wo_ref   : (H, Dh, E)  bf16  output-projection weight, head-major
    bo_ref   : (1, E)      f32   output-projection bias
    o_ref    : (S, E)      f32   output slab
    """
    s_len, e = x_ref.shape

    # ---- fused Q/K/V projection: one long MXU contraction, f32 accumulation ----
    qkv = jnp.dot(x_ref[...], wqkv_ref[...],
                  preferred_element_type=jnp.float32) + bqkv_ref[...]       # (S, 3E)

    def heads(t):  # (S, E) -> (H, S, Dh)
        return jnp.transpose(t.reshape(s_len, num_heads, head_dim), (1, 0, 2))

    q = heads(qkv[:, :e]).astype(jnp.bfloat16)          # 1/sqrt(Dh) already folded in
    k = heads(qkv[:, e:2 * e]).astype(jnp.bfloat16)
    v = heads(qkv[:, 2 * e:]).astype(jnp.bfloat16)

    # ---- scaled dot-product attention, batched over heads ----------------------
    s = jnp.einsum('hqd,hkd->hqk', q, k,
                   preferred_element_type=jnp.float32)                      # (H, S, S) f32
    p = jnp.exp(s - jnp.max(s, axis=-1, keepdims=True))
    l = jnp.sum(p, axis=-1, keepdims=True)                                  # (H, S, 1) f32

    oh = jnp.einsum('hqk,hkd->hqd', p.astype(jnp.bfloat16), v,
                    preferred_element_type=jnp.float32)                     # (H, S, Dh) f32
    # Normalise after the PV matmul: H*S*Dh multiplies instead of H*S*S;
    # the reciprocal runs on the EUP slot (effectively free).
    oh = oh * pl.reciprocal(l, approx=True)

    # ---- output projection without re-merging heads into lanes -----------------
    # Per-head (S,Dh)x(Dh,E) batched matmul against W_out^(H,Dh,E), then a cheap
    # VALU sum over heads (no XLU transpose / relayout copy).
    outh = jnp.einsum('hqd,hde->hqe', oh.astype(jnp.bfloat16), wo_ref[...],
                      preferred_element_type=jnp.float32)                   # (H, S, E) f32
    o_ref[...] = (jnp.sum(outh, axis=0) + bo_ref[...]).astype(o_ref.dtype)


def multihead_self_attention(x, in_proj_weight, in_proj_bias,
                             out_proj_weight, out_proj_bias, *, num_heads):
    """x: (B, S, E).  Weights follow PyTorch nn.MultiheadAttention layout:
       in_proj_weight (3E, E), in_proj_bias (3E,), out_proj_weight (E, E),
       out_proj_bias (E,).  Returns (B, S, E) float32."""
    b, s, e = x.shape
    assert e % num_heads == 0
    head_dim = e // num_heads
    scale = 1.0 / (head_dim ** 0.5)
    f32, bf16 = jnp.float32, jnp.bfloat16

    ipw = in_proj_weight.astype(f32)      # (3E, E), rows ordered q | k | v
    ipb = in_proj_bias.astype(f32)        # (3E,)

    # Wrapper-side layout plumbing (free relative to in-kernel shuffles):
    #   * fuse q|k|v into one pre-transposed (E, 3E) operand,
    #   * fold the 1/sqrt(Dh) attention scale into the q columns / q bias,
    #   * reshape W_out^T to (H, Dh, E) so the kernel contracts heads directly,
    #   * MXU weight operands in bf16; biases stay f32 (added post-accumulation).
    col_scale = jnp.concatenate(
        [jnp.full((e,), scale, f32), jnp.ones((2 * e,), f32)])
    wqkv = (ipw.T * col_scale).astype(bf16)                     # (E, 3E)
    bqkv = (ipb * col_scale).reshape(1, 3 * e)                  # (1, 3E) f32
    wo = out_proj_weight.astype(f32).T.reshape(num_heads, head_dim, e).astype(bf16)
    bo = out_proj_bias.astype(f32).reshape(1, e)

    kernel = functools.partial(_mha_kernel, num_heads=num_heads,
                               head_dim=head_dim)

    def call(single_buffer_weights):
        # Grid-invariant weight/bias blocks never change across the grid, so
        # double-buffering them only wastes VMEM -> request a single buffer.
        mode = pl.Buffered(1) if single_buffer_weights else None

        def const_spec(shape):
            idx = lambda i, _n=len(shape): (0,) * _n
            if mode is None:
                return pl.BlockSpec(shape, idx)
            return pl.BlockSpec(shape, idx, pipeline_mode=mode)

        return pl.pallas_call(
            kernel,
            out_shape=jax.ShapeDtypeStruct((b, s, e), f32),
            grid_spec=pltpu.PrefetchScalarGridSpec(
                num_scalar_prefetch=0,
                grid=(b,),
                in_specs=[
                    pl.BlockSpec((None, s, e), lambda i: (i, 0, 0)),  # x slab, bf16
                    const_spec((e, 3 * e)),                           # fused W_qkv^T
                    const_spec((1, 3 * e)),                           # fused b_qkv
                    const_spec((num_heads, head_dim, e)),             # W_out^T as (H,Dh,E)
                    const_spec((1, e)),                               # b_out
                ],
                out_specs=pl.BlockSpec((None, s, e), lambda i: (i, 0, 0)),
            ),
            compiler_params=pltpu.CompilerParams(
                dimension_semantics=("parallel",),
                vmem_limit_bytes=48 * 1024 * 1024),
        )(x.astype(bf16), wqkv, bqkv, wo, bo)

    try:
        return call(single_buffer_weights=True)
    except Exception:
        # Version-skew guard: if this jax build does not support
        # pipeline_mode=pl.Buffered(1) on the main pipeline, fall back to the
        # identical kernel with default double-buffered weights.
        return call(single_buffer_weights=False)


def _reference(x, in_proj_weight, in_proj_bias, out_proj_weight, out_proj_bias,
               *, num_heads):
    """Pure-JAX f32 reference mirroring torch.nn.MultiheadAttention (eval, no mask)."""
    b, s, e = x.shape
    dh = e // num_heads
    qkv = jnp.einsum('bse,fe->bsf', x, in_proj_weight) + in_proj_bias  # (B,S,3E)
    q, k, v = jnp.split(qkv, 3, axis=-1)

    def to_heads(t):
        return t.reshape(b, s, num_heads, dh).transpose(0, 2, 1, 3)   # (B,H,S,Dh)

    q, k, v = to_heads(q), to_heads(k), to_heads(v)
    scores = jnp.einsum('bhqd,bhkd->bhqk', q, k) / jnp.sqrt(dh)
    p = jax.nn.softmax(scores, axis=-1)
    o = jnp.einsum('bhqk,bhkd->bhqd', p, v)                           # (B,H,S,Dh)
    o = o.transpose(0, 2, 1, 3).reshape(b, s, e)
    return jnp.einsum('bse,fe->bsf', o, out_proj_weight) + out_proj_bias


if __name__ == "__main__":
    # Small shapes consistent with the module: batch=2, seq=8, embed_dim=32, heads=4.
    B, S, E, H = 2, 8, 32, 4

    key = jax.random.PRNGKey(0)
    kx, k1, k2, k3, k4 = jax.random.split(key, 5)

    x = jax.random.normal(kx, (B, S, E), dtype=jnp.float32)

    # Deterministic parameter init (shapes match nn.MultiheadAttention):
    in_proj_weight = 0.1 * jax.random.normal(k1, (3 * E, E), dtype=jnp.float32)
    in_proj_bias = 0.1 * jax.random.normal(k2, (3 * E,), dtype=jnp.float32)
    out_proj_weight = 0.1 * jax.random.normal(k3, (E, E), dtype=jnp.float32)
    out_proj_bias = 0.1 * jax.random.normal(k4, (E,), dtype=jnp.float32)

    out = multihead_self_attention(
        x, in_proj_weight, in_proj_bias, out_proj_weight, out_proj_bias,
        num_heads=H)
    out = jax.block_until_ready(out)

    ref = _reference(
        x, in_proj_weight, in_proj_bias, out_proj_weight, out_proj_bias,
        num_heads=H)

    assert out.shape == (B, S, E)
    # bf16 MXU operands + approx reciprocal => relaxed tolerance vs the f32 reference.
    max_err = float(jnp.max(jnp.abs(out - ref)))
    assert max_err < 2e-2, f"max err {max_err}"

    print("KERNEL_OK")
</pallas_src>

<mosaic_0001>
module attributes {stable_mosaic.version = 11 : i64} {
  func.func @_mha_kernel(%arg0: i32, %arg1: memref<1x8x32xbf16, #tpu.memory_space<vmem>>, %arg2: memref<32x96xbf16, #tpu.memory_space<vmem>>, %arg3: memref<1x96xf32, #tpu.memory_space<vmem>>, %arg4: memref<4x8x32xbf16, #tpu.memory_space<vmem>>, %arg5: memref<1x32xf32, #tpu.memory_space<vmem>>, %arg6: memref<1x8x32xf32, #tpu.memory_space<vmem>>) attributes {dimension_semantics = [#tpu.dimension_semantics<parallel>], iteration_bounds = array<i64: 2>, scalar_prefetch = 0 : i64, scratch_operands = 0 : i64, tpu.core_type = #tpu.core_type<tc>, window_params = [{transform_indices = @transform_0, window_bounds = array<i64: 1, 8, 32>}, {pipeline_mode = #tpu.pipeline_mode<synchronous>, transform_indices = @transform_1, window_bounds = array<i64: 32, 96>}, {pipeline_mode = #tpu.pipeline_mode<synchronous>, transform_indices = @transform_2, window_bounds = array<i64: 1, 96>}, {pipeline_mode = #tpu.pipeline_mode<synchronous>, transform_indices = @transform_3, window_bounds = array<i64: 4, 8, 32>}, {pipeline_mode = #tpu.pipeline_mode<synchronous>, transform_indices = @transform_4, window_bounds = array<i64: 1, 32>}, {transform_indices = @transform_5, window_bounds = array<i64: 1, 8, 32>}]} {
    %c0 = arith.constant 0 : index
    %c0_0 = arith.constant 0 : index
    %c0_1 = arith.constant 0 : index
    %0 = vector.load %arg1[%c0, %c0_0, %c0_1] : memref<1x8x32xbf16, #tpu.memory_space<vmem>>, vector<1x8x32xbf16>
    %1 = vector.shape_cast %0 : vector<1x8x32xbf16> to vector<8x32xbf16>
    %c0_2 = arith.constant 0 : index
    %c0_3 = arith.constant 0 : index
    %2 = vector.load %arg2[%c0_2, %c0_3] : memref<32x96xbf16, #tpu.memory_space<vmem>>, vector<32x96xbf16>
    %cst = arith.constant dense<0.000000e+00> : vector<8x96xf32>
    %3 = tpu.matmul %1, %2, %cst {dimension_numbers = #tpu.dot_dimension_numbers<[1], [0], [0], [1], [0, 0, 1, 1], [], []>} : vector<8x32xbf16>, vector<32x96xbf16>, vector<8x96xf32> -> vector<8x96xf32>
    %c0_4 = arith.constant 0 : index
    %c0_5 = arith.constant 0 : index
    %4 = vector.load %arg3[%c0_4, %c0_5] : memref<1x96xf32, #tpu.memory_space<vmem>>, vector<1x96xf32>
    %5 = vector.broadcast %4 : vector<1x96xf32> to vector<8x96xf32>
    %6 = arith.addf %3, %5 : vector<8x96xf32>
    %7 = vector.extract_strided_slice %6 {offsets = [0, 0], sizes = [8, 32], strides = [1, 1]} : vector<8x96xf32> to vector<8x32xf32>
    %8 = vector.shape_cast %7 : vector<8x32xf32> to vector<8x4x8xf32>
    %9 = tpu.transpose %8, [1, 0, 2] : vector<8x4x8xf32> -> vector<4x8x8xf32>
    %10 = arith.truncf %9 : vector<4x8x8xf32> to vector<4x8x8xbf16>
    %11 = vector.extract_strided_slice %6 {offsets = [0, 32], sizes = [8, 32], strides = [1, 1]} : vector<8x96xf32> to vector<8x32xf32>
    %12 = vector.shape_cast %11 : vector<8x32xf32> to vector<8x4x8xf32>
    %13 = tpu.transpose %12, [1, 0, 2] : vector<8x4x8xf32> -> vector<4x8x8xf32>
    %14 = arith.truncf %13 : vector<4x8x8xf32> to vector<4x8x8xbf16>
    %15 = vector.extract_strided_slice %6 {offsets = [0, 64], sizes = [8, 32], strides = [1, 1]} : vector<8x96xf32> to vector<8x32xf32>
    %16 = vector.shape_cast %15 : vector<8x32xf32> to vector<8x4x8xf32>
    %17 = tpu.transpose %16, [1, 0, 2] : vector<8x4x8xf32> -> vector<4x8x8xf32>
    %18 = arith.truncf %17 : vector<4x8x8xf32> to vector<4x8x8xbf16>
    "tpu.trace_start"() <{level = 10 : i32, message = "hqd,hkd->hqk"}> : () -> ()
    %cst_6 = arith.constant dense<0.000000e+00> : vector<4x8x8xf32>
    %19 = tpu.matmul %10, %14, %cst_6 {dimension_numbers = #tpu.dot_dimension_numbers<[2], [2], [1], [1], [0, 0, 0, 1, 1, 1], [0], [0]>} : vector<4x8x8xbf16>, vector<4x8x8xbf16>, vector<4x8x8xf32> -> vector<4x8x8xf32>
    "tpu.trace_stop"() : () -> ()
    %cst_7 = arith.constant dense<0xFF800000> : vector<4x8xf32>
    %20 = vector.multi_reduction <maximumf>, %19, %cst_7 [2] : vector<4x8x8xf32> to vector<4x8xf32>
    %21 = vector.shape_cast %20 : vector<4x8xf32> to vector<4x8x1xf32>
    %22 = vector.broadcast %21 : vector<4x8x1xf32> to vector<4x8x8xf32>
    %23 = arith.subf %19, %22 : vector<4x8x8xf32>
    %24 = math.exp %23 : vector<4x8x8xf32>
    %cst_8 = arith.constant dense<0.000000e+00> : vector<4x8xf32>
    %25 = vector.multi_reduction <add>, %24, %cst_8 [2] : vector<4x8x8xf32> to vector<4x8xf32>
    %26 = vector.shape_cast %25 : vector<4x8xf32> to vector<4x8x1xf32>
    %27 = arith.truncf %24 : vector<4x8x8xf32> to vector<4x8x8xbf16>
    "tpu.trace_start"() <{level = 10 : i32, message = "hqk,hkd->hqd"}> : () -> ()
    %cst_9 = arith.constant dense<0.000000e+00> : vector<4x8x8xf32>
    %28 = tpu.matmul %27, %18, %cst_9 {dimension_numbers = #tpu.dot_dimension_numbers<[2], [1], [1], [2], [0, 0, 0, 1, 1, 2], [0], [0]>} : vector<4x8x8xbf16>, vector<4x8x8xbf16>, vector<4x8x8xf32> -> vector<4x8x8xf32>
    "tpu.trace_stop"() : () -> ()
    %29 = tpu.reciprocal %26 {approx = true} : vector<4x8x1xf32> -> vector<4x8x1xf32>
    %30 = vector.broadcast %29 : vector<4x8x1xf32> to vector<4x8x8xf32>
    %31 = arith.mulf %28, %30 : vector<4x8x8xf32>
    %32 = arith.truncf %31 : vector<4x8x8xf32> to vector<4x8x8xbf16>
    %c0_10 = arith.constant 0 : index
    %c0_11 = arith.constant 0 : index
    %c0_12 = arith.constant 0 : index
    %33 = vector.load %arg4[%c0_10, %c0_11, %c0_12] : memref<4x8x32xbf16, #tpu.memory_space<vmem>>, vector<4x8x32xbf16>
    "tpu.trace_start"() <{level = 10 : i32, message = "hqd,hde->hqe"}> : () -> ()
    %cst_13 = arith.constant dense<0.000000e+00> : vector<4x8x32xf32>
    %34 = tpu.matmul %32, %33, %cst_13 {dimension_numbers = #tpu.dot_dimension_numbers<[2], [1], [1], [2], [0, 0, 0, 1, 1, 2], [0], [0]>} : vector<4x8x8xbf16>, vector<4x8x32xbf16>, vector<4x8x32xf32> -> vector<4x8x32xf32>
    "tpu.trace_stop"() : () -> ()
    %cst_14 = arith.constant dense<0.000000e+00> : vector<8x32xf32>
    %35 = vector.multi_reduction <add>, %34, %cst_14 [0] : vector<4x8x32xf32> to vector<8x32xf32>
    %c0_15 = arith.constant 0 : index
    %c0_16 = arith.constant 0 : index
    %36 = vector.load %arg5[%c0_15, %c0_16] : memref<1x32xf32, #tpu.memory_space<vmem>>, vector<1x32xf32>
    %37 = vector.broadcast %36 : vector<1x32xf32> to vector<8x32xf32>
    %38 = arith.addf %35, %37 : vector<8x32xf32>
    %c0_17 = arith.constant 0 : index
    %c0_18 = arith.constant 0 : index
    %c0_19 = arith.constant 0 : index
    %39 = vector.load %arg6[%c0_17, %c0_18, %c0_19] : memref<1x8x32xf32, #tpu.memory_space<vmem>>, vector<1x8x32xf32>
    %40 = vector.shape_cast %39 : vector<1x8x32xf32> to vector<8x32xf32>
    %41 = vector.shape_cast %38 : vector<8x32xf32> to vector<1x8x32xf32>
    tpu.vector_store %arg6[%c0_17, %c0_18, %c0_19], %41 {strides = array<i32>} : memref<1x8x32xf32, #tpu.memory_space<vmem>>, vector<1x8x32xf32>,
    return
  }
  func.func @transform_0(%arg0: i32) -> (i32, i32, i32) {
    %c0_i32 = arith.constant 0 : i32
    %c0_i32_0 = arith.constant 0 : i32
    %c0_i32_1 = arith.constant 0 : i32
    return %arg0, %c0_i32, %c0_i32_0 : i32, i32, i32
  }
  func.func @transform_1(%arg0: i32) -> (i32, i32) {
    %c0_i32 = arith.constant 0 : i32
    %c0_i32_0 = arith.constant 0 : i32
    %c0_i32_1 = arith.constant 0 : i32
    return %c0_i32, %c0_i32_0 : i32, i32
  }
  func.func @transform_2(%arg0: i32) -> (i32, i32) {
    %c0_i32 = arith.constant 0 : i32
    %c0_i32_0 = arith.constant 0 : i32
    %c0_i32_1 = arith.constant 0 : i32
    return %c0_i32, %c0_i32_0 : i32, i32
  }
  func.func @transform_3(%arg0: i32) -> (i32, i32, i32) {
    %c0_i32 = arith.constant 0 : i32
    %c0_i32_0 = arith.constant 0 : i32
    %c0_i32_1 = arith.constant 0 : i32
    %c0_i32_2 = arith.constant 0 : i32
    return %c0_i32, %c0_i32_0, %c0_i32_1 : i32, i32, i32
  }
  func.func @transform_4(%arg0: i32) -> (i32, i32) {
    %c0_i32 = arith.constant 0 : i32
    %c0_i32_0 = arith.constant 0 : i32
    %c0_i32_1 = arith.constant 0 : i32
    return %c0_i32, %c0_i32_0 : i32, i32
  }
  func.func @transform_5(%arg0: i32) -> (i32, i32, i32) {
    %c0_i32 = arith.constant 0 : i32
    %c0_i32_0 = arith.constant 0 : i32
    %c0_i32_1 = arith.constant 0 : i32
    return %arg0, %c0_i32, %c0_i32_0 : i32, i32, i32
  }
}

module attributes {stable_mosaic.version = 11 : i64} {
  func.func @_mha_kernel(%arg0: i32, %arg1: memref<1x8x32xbf16, #tpu.memory_space<vmem>>, %arg2: memref<32x96xbf16, #tpu.memory_space<vmem>>, %arg3: memref<1x96xf32, #tpu.memory_space<vmem>>, %arg4: memref<4x8x32xbf16, #tpu.memory_space<vmem>>, %arg5: memref<1x32xf32, #tpu.memory_space<vmem>>, %arg6: memref<1x8x32xf32, #tpu.memory_space<vmem>>) attributes {dimension_semantics = [#tpu.dimension_semantics<parallel>], iteration_bounds = array<i64: 2>, scalar_prefetch = 0 : i64, scratch_operands = 0 : i64, tpu.core_type = #tpu.core_type<tc>, window_params = [{transform_indices = @transform_0, window_bounds = array<i64: 1, 8, 32>}, {pipeline_mode = #tpu.pipeline_mode<synchronous>, transform_indices = @transform_1, window_bounds = array<i64: 32, 96>}, {pipeline_mode = #tpu.pipeline_mode<synchronous>, transform_indices = @transform_2, window_bounds = array<i64: 1, 96>}, {pipeline_mode = #tpu.pipeline_mode<synchronous>, transform_indices = @transform_3, window_bounds = array<i64: 4, 8, 32>}, {pipeline_mode = #tpu.pipeline_mode<synchronous>, transform_indices = @transform_4, window_bounds = array<i64: 1, 32>}, {transform_indices = @transform_5, window_bounds = array<i64: 1, 8, 32>}]} {
    %c0 = arith.constant 0 : index
    %c0_0 = arith.constant 0 : index
    %c0_1 = arith.constant 0 : index
    %0 = vector.load %arg1[%c0, %c0_0, %c0_1] : memref<1x8x32xbf16, #tpu.memory_space<vmem>>, vector<1x8x32xbf16>
    %1 = vector.shape_cast %0 : vector<1x8x32xbf16> to vector<8x32xbf16>
    %c0_2 = arith.constant 0 : index
    %c0_3 = arith.constant 0 : index
    %2 = vector.load %arg2[%c0_2, %c0_3] : memref<32x96xbf16, #tpu.memory_space<vmem>>, vector<32x96xbf16>
    %cst = arith.constant dense<0.000000e+00> : vector<8x96xf32>
    %3 = tpu.matmul %1, %2, %cst {dimension_numbers = #tpu.dot_dimension_numbers<[1], [0], [0], [1], [0, 0, 1, 1], [], []>} : vector<8x32xbf16>, vector<32x96xbf16>, vector<8x96xf32> -> vector<8x96xf32>
    %c0_4 = arith.constant 0 : index
    %c0_5 = arith.constant 0 : index
    %4 = vector.load %arg3[%c0_4, %c0_5] : memref<1x96xf32, #tpu.memory_space<vmem>>, vector<1x96xf32>
    %5 = vector.broadcast %4 : vector<1x96xf32> to vector<8x96xf32>
    %6 = arith.addf %3, %5 : vector<8x96xf32>
    %7 = vector.extract_strided_slice %6 {offsets = [0, 0], sizes = [8, 32], strides = [1, 1]} : vector<8x96xf32> to vector<8x32xf32>
    %8 = vector.shape_cast %7 : vector<8x32xf32> to vector<8x4x8xf32>
    %9 = tpu.transpose %8, [1, 0, 2] : vector<8x4x8xf32> -> vector<4x8x8xf32>
    %10 = arith.truncf %9 : vector<4x8x8xf32> to vector<4x8x8xbf16>
    %11 = vector.extract_strided_slice %6 {offsets = [0, 32], sizes = [8, 32], strides = [1, 1]} : vector<8x96xf32> to vector<8x32xf32>
    %12 = vector.shape_cast %11 : vector<8x32xf32> to vector<8x4x8xf32>
    %13 = tpu.transpose %12, [1, 0, 2] : vector<8x4x8xf32> -> vector<4x8x8xf32>
    %14 = arith.truncf %13 : vector<4x8x8xf32> to vector<4x8x8xbf16>
    %15 = vector.extract_strided_slice %6 {offsets = [0, 64], sizes = [8, 32], strides = [1, 1]} : vector<8x96xf32> to vector<8x32xf32>
    %16 = vector.shape_cast %15 : vector<8x32xf32> to vector<8x4x8xf32>
    %17 = tpu.transpose %16, [1, 0, 2] : vector<8x4x8xf32> -> vector<4x8x8xf32>
    %18 = arith.truncf %17 : vector<4x8x8xf32> to vector<4x8x8xbf16>
    "tpu.trace_start"() <{level = 10 : i32, message = "hqd,hkd->hqk"}> : () -> ()
    %cst_6 = arith.constant dense<0.000000e+00> : vector<4x8x8xf32>
    %19 = tpu.matmul %10, %14, %cst_6 {dimension_numbers = #tpu.dot_dimension_numbers<[2], [2], [1], [1], [0, 0, 0, 1, 1, 1], [0], [0]>} : vector<4x8x8xbf16>, vector<4x8x8xbf16>, vector<4x8x8xf32> -> vector<4x8x8xf32>
    "tpu.trace_stop"() : () -> ()
    %cst_7 = arith.constant dense<0xFF800000> : vector<4x8xf32>
    %20 = vector.multi_reduction <maximumf>, %19, %cst_7 [2] : vector<4x8x8xf32> to vector<4x8xf32>
    %21 = vector.shape_cast %20 : vector<4x8xf32> to vector<4x8x1xf32>
    %22 = vector.broadcast %21 : vector<4x8x1xf32> to vector<4x8x8xf32>
    %23 = arith.subf %19, %22 : vector<4x8x8xf32>
    %24 = math.exp %23 : vector<4x8x8xf32>
    %cst_8 = arith.constant dense<0.000000e+00> : vector<4x8xf32>
    %25 = vector.multi_reduction <add>, %24, %cst_8 [2] : vector<4x8x8xf32> to vector<4x8xf32>
    %26 = vector.shape_cast %25 : vector<4x8xf32> to vector<4x8x1xf32>
    %27 = arith.truncf %24 : vector<4x8x8xf32> to vector<4x8x8xbf16>
    "tpu.trace_start"() <{level = 10 : i32, message = "hqk,hkd->hqd"}> : () -> ()
    %cst_9 = arith.constant dense<0.000000e+00> : vector<4x8x8xf32>
    %28 = tpu.matmul %27, %18, %cst_9 {dimension_numbers = #tpu.dot_dimension_numbers<[2], [1], [1], [2], [0, 0, 0, 1, 1, 2], [0], [0]>} : vector<4x8x8xbf16>, vector<4x8x8xbf16>, vector<4x8x8xf32> -> vector<4x8x8xf32>
    "tpu.trace_stop"() : () -> ()
    %29 = tpu.reciprocal %26 {approx = true} : vector<4x8x1xf32> -> vector<4x8x1xf32>
    %30 = vector.broadcast %29 : vector<4x8x1xf32> to vector<4x8x8xf32>
    %31 = arith.mulf %28, %30 : vector<4x8x8xf32>
    %32 = arith.truncf %31 : vector<4x8x8xf32> to vector<4x8x8xbf16>
    %c0_10 = arith.constant 0 : index
    %c0_11 = arith.constant 0 : index
    %c0_12 = arith.constant 0 : index
    %33 = vector.load %arg4[%c0_10, %c0_11, %c0_12] : memref<4x8x32xbf16, #tpu.memory_space<vmem>>, vector<4x8x32xbf16>
    "tpu.trace_start"() <{level = 10 : i32, message = "hqd,hde->hqe"}> : () -> ()
    %cst_13 = arith.constant dense<0.000000e+00> : vector<4x8x32xf32>
    %34 = tpu.matmul %32, %33, %cst_13 {dimension_numbers = #tpu.dot_dimension_numbers<[2], [1], [1], [2], [0, 0, 0, 1, 1, 2], [0], [0]>} : vector<4x8x8xbf16>, vector<4x8x32xbf16>, vector<4x8x32xf32> -> vector<4x8x32xf32>
    "tpu.trace_stop"() : () -> ()
    %cst_14 = arith.constant dense<0.000000e+00> : vector<8x32xf32>
    %35 = vector.multi_reduction <add>, %34, %cst_14 [0] : vector<4x8x32xf32> to vector<8x32xf32>
    %c0_15 = arith.constant 0 : index
    %c0_16 = arith.constant 0 : index
    %36 = vector.load %arg5[%c0_15, %c0_16] : memref<1x32xf32, #tpu.memory_space<vmem>>, vector<1x32xf32>
    %37 = vector.broadcast %36 : vector<1x32xf32> to vector<8x32xf32>
    %38 = arith.addf %35, %37 : vector<8x32xf32>
    %c0_17 = arith.constant 0 : index
    %c0_18 = arith.constant 0 : index
    %c0_19 = arith.constant 0 : index
    %39 = vector.load %arg6[%c0_17, %c0_18, %c0_19] : memref<1x8x32xf32, #tpu.memory_space<vmem>>, vector<1x8x32xf32>
    %40 = vector.shape_cast %39 : vector<1x8x32xf32> to vector<8x32xf32>
    %41 = vector.shape_cast %38 : vector<8x32xf32> to vector<1x8x32xf32>
    tpu.vector_store %arg6[%c0_17, %c0_18, %c0_19], %41 {strides = array<i32>} : memref<1x8x32xf32, #tpu.memory_space<vmem>>, vector<1x8x32xf32>,
    return
  }
  func.func @transform_0(%arg0: i32) -> (i32, i32, i32) {
    %c0_i32 = arith.constant 0 : i32
    %c0_i32_0 = arith.constant 0 : i32
    %c0_i32_1 = arith.constant 0 : i32
    return %arg0, %c0_i32, %c0_i32_0 : i32, i32, i32
  }
  func.func @transform_1(%arg0: i32) -> (i32, i32) {
    %c0_i32 = arith.constant 0 : i32
    %c0_i32_0 = arith.constant 0 : i32
    %c0_i32_1 = arith.constant 0 : i32
    return %c0_i32, %c0_i32_0 : i32, i32
  }
  func.func @transform_2(%arg0: i32) -> (i32, i32) {
    %c0_i32 = arith.constant 0 : i32
    %c0_i32_0 = arith.constant 0 : i32
    %c0_i32_1 = arith.constant 0 : i32
    return %c0_i32, %c0_i32_0 : i32, i32
  }
  func.func @transform_3(%arg0: i32) -> (i32, i32, i32) {
    %c0_i32 = arith.constant 0 : i32
    %c0_i32_0 = arith.constant 0 : i32
    %c0_i32_1 = arith.constant 0 : i32
    %c0_i32_2 = arith.constant 0 : i32
    return %c0_i32, %c0_i32_0, %c0_i32_1 : i32, i32, i32
  }
  func.func @transform_4(%arg0: i32) -> (i32, i32) {
    %c0_i32 = arith.constant 0 : i32
    %c0_i32_0 = arith.constant 0 : i32
    %c0_i32_1 = arith.constant 0 : i32
    return %c0_i32, %c0_i32_0 : i32, i32
  }
  func.func @transform_5(%arg0: i32) -> (i32, i32, i32) {
    %c0_i32 = arith.constant 0 : i32
    %c0_i32_0 = arith.constant 0 : i32
    %c0_i32_1 = arith.constant 0 : i32
    return %arg0, %c0_i32, %c0_i32_0 : i32, i32, i32
  }
}

</mosaic_0001>

<llo_original>
// kernel: tpu_custom_call.1
$region0: #{tpu_custom_call.1}
  #allocation0 [shape = 'u32[]', space=smem, size = 0x4, offset = 0x4, fixed_abs, tag = 'smem constant byte address 0x4 - core index']
  #allocation1 [shape = 'u32[144,128]{1,0:T(1,128)}', space=vmem, size = 0x12000, scoped, tag = 'internal scratch']
  %s0 = inlined_call_operand.hbm [shape: bf16[2,8,32], index: 0, kind: input, shape index: {}]
  %s1 = inlined_call_operand.hbm [shape: bf16[32,96], index: 1, kind: input, shape index: {}]
  %s2 = inlined_call_operand.vmem [shape: f32[1,96], index: 2, kind: input, shape index: {}]
  %s3 = inlined_call_operand.hbm [shape: bf16[4,8,32], index: 3, kind: input, shape index: {}]
  %s4 = inlined_call_operand.vmem [shape: f32[1,32], index: 4, kind: input, shape index: {}]
  %s5 = inlined_call_operand.hbm [shape: f32[2,8,32], index: 5, kind: output, shape index: {}]
  %s6 = sld [smem:[#allocation0]]
  $region65: #{tpu_custom_call.1} parent=0
    _
  %s8 = ssub.s32 1, %s6
  %s9 = scalar_select 0, %s8, %s6
  $region1: #{tpu_custom_call.1} parent=0
    #allocation2 [shape = 'u8[4096]{0}', space=vmem, size = 0x1000, scoped, tag = 'input window, operand 0']
    #allocation3 [shape = 's32[2]{0}', space=sflag, size = 0x8, scoped, tag = 'scoped memory for tpu_custom_call.1']
    #allocation4 [shape = 's32[2]{0}', space=sflag, size = 0x8, scoped, tag = 'scoped memory for tpu_custom_call.1']
    #allocation5 [shape = 'u8[8192]{0}', space=vmem, size = 0x2000, scoped, tag = 'input window, operand 1, single buffered']
    #allocation6 [shape = 's32[1]{0}', space=sflag, size = 0x4, scoped, tag = 'scoped memory for tpu_custom_call.1']
    #allocation7 [shape = 'u8[8192]{0}', space=vmem, size = 0x2000, scoped, tag = 'input window, operand 3, single buffered']
    #allocation8 [shape = 'u8[8192]{0}', space=vmem, size = 0x2000, scoped, tag = 'output window, operand 0']
    %10 = vsyncpa [#allocation3], 0
    %s11 = scalar_lea.sflag [#allocation3], 1
    %12 = vsyncpa %s11, 0
    %13 = vsyncpa [#allocation6], 0
    %14 = vsyncpa [#allocation4], 0
    %s15 = scalar_lea.sflag [#allocation4], 1
    %16 = vsyncpa %s15, 0
    loop: start=0, step=1, limit=4
    $region2: #{tpu_custom_call.1} parent=1 // loop_pre_header
      _
    $region3: #{tpu_custom_call.1} parent=1 // loop_header
      %s18 = sphi 0, %s22
      %p19 = scmp.ge.s32.totalorder %s18, 4
      %s28 = sphi 0, %s30
      %s31 = sphi 0, %s28
      %s32 = sphi 0, %s31
      %s48 = sphi 0, %s32
      %s52 = sphi 0, %s52
      %s54 = sphi 0, %s52
      %s55 = sphi 0, %s54
      %s69 = sphi 0, %s55
      %s73 = sphi 0, %s73
      %s75 = sphi 0, %s73
      %s76 = sphi 0, %s75
      %s90 = sphi 0, %s76
      %s94 = sphi 0, %s94
      %s96 = sphi 0, %s94
      %s97 = sphi 0, %s96
      %s111 = sphi 0, %s97
      %s115 = sphi 0, %s115
      %s117 = sphi 0, %s115
      %s118 = sphi 0, %s117
      %s132 = sphi 0, %s118
      %s138 = sphi 0, %s140
      %s141 = sphi 0, %s138
      %s142 = sphi 0, %s141
      %s158 = sphi 0, %s142
    $region4: #{tpu_custom_call.1} parent=1 // loop_header_branch
      %21 = sbr.rel (%p19) target = $region8
    $region5: #{tpu_custom_call.1} parent=1 // loop_body
      %s23 = ssub.s32 %s18, 1
      %s24 = ssub.s32 %s18, 2
      %s25 = sadd.s32 %s18, 1
      %s26 = ssub.s32 %s18, %s25
      %p27 = scmp.eq.s32.totalorder %s26, 0
      %s29 = sadd.s32 %s28, 1
      %s30 = scalar_select %p27, %s28, %s29
      %p33 = pneg %p27
      %p34 = scmp.eq.s32.totalorder %s18, 1
      %p35 = por %p33, %p34
      %p36 = scmp.ne.s32.totalorder %s28, %s31
      %p37 = scmp.eq.s32.totalorder %s18, 0
      %p38 = por %p36, %p37
      %p39 = scmp.ne.s32.totalorder %s28, %s31
      %p40 = scmp.eq.s32.totalorder %s23, 1
      %p41 = por %p39, %p40
      %p42 = scmp.ne.s32.totalorder %s31, %s32
      %p43 = scmp.eq.s32.totalorder %s23, 0
      %p44 = por %p42, %p43
      %p45 = scmp.ne.s32.totalorder %s31, %s32
      %p46 = scmp.eq.s32.totalorder %s24, 1
      %p47 = por %p45, %p46
      %p49 = scmp.ne.s32.totalorder %s32, %s48
      %p50 = scmp.eq.s32.totalorder %s24, 0
      %p51 = por %p49, %p50
      %s53 = sadd.s32 %s52, 1
      %p56 = scmp.eq.s32.totalorder %s18, 1
      %p57 = scmp.ne.s32.totalorder %s52, %s54
      %p58 = scmp.eq.s32.totalorder %s18, 0
      %p59 = por %p57, %p58
      %p60 = scmp.ne.s32.totalorder %s52, %s54
      %p61 = scmp.eq.s32.totalorder %s23, 1
      %p62 = por %p60, %p61
      %p63 = scmp.ne.s32.totalorder %s54, %s55
      %p64 = scmp.eq.s32.totalorder %s23, 0
      %p65 = por %p63, %p64
      %p66 = scmp.ne.s32.totalorder %s54, %s55
      %p67 = scmp.eq.s32.totalorder %s24, 1
      %p68 = por %p66, %p67
      %p70 = scmp.ne.s32.totalorder %s55, %s69
      %p71 = scmp.eq.s32.totalorder %s24, 0
      %p72 = por %p70, %p71
      %s74 = sadd.s32 %s73, 1
      %p77 = scmp.eq.s32.totalorder %s18, 1
      %p78 = scmp.ne.s32.totalorder %s73, %s75
      %p79 = scmp.eq.s32.totalorder %s18, 0
      %p80 = por %p78, %p79
      %p81 = scmp.ne.s32.totalorder %s73, %s75
      %p82 = scmp.eq.s32.totalorder %s23, 1
      %p83 = por %p81, %p82
      %p84 = scmp.ne.s32.totalorder %s75, %s76
      %p85 = scmp.eq.s32.totalorder %s23, 0
      %p86 = por %p84, %p85
      %p87 = scmp.ne.s32.totalorder %s75, %s76
      %p88 = scmp.eq.s32.totalorder %s24, 1
      %p89 = por %p87, %p88
      %p91 = scmp.ne.s32.totalorder %s76, %s90
      %p92 = scmp.eq.s32.totalorder %s24, 0
      %p93 = por %p91, %p92
      %s95 = sadd.s32 %s94, 1
      %p98 = scmp.eq.s32.totalorder %s18, 1
      %p99 = scmp.ne.s32.totalorder %s94, %s96
      %p100 = scmp.eq.s32.totalorder %s18, 0
      %p101 = por %p99, %p100
      %p102 = scmp.ne.s32.totalorder %s94, %s96
      %p103 = scmp.eq.s32.totalorder %s23, 1
      %p104 = por %p102, %p103
      %p105 = scmp.ne.s32.totalorder %s96, %s97
      %p106 = scmp.eq.s32.totalorder %s23, 0
      %p107 = por %p105, %p106
      %p108 = scmp.ne.s32.totalorder %s96, %s97
      %p109 = scmp.eq.s32.totalorder %s24, 1
      %p110 = por %p108, %p109
      %p112 = scmp.ne.s32.totalorder %s97, %s111
      %p113 = scmp.eq.s32.totalorder %s24, 0
      %p114 = por %p112, %p113
      %s116 = sadd.s32 %s115, 1
      %p119 = scmp.eq.s32.totalorder %s18, 1
      %p120 = scmp.ne.s32.totalorder %s115, %s117
      %p121 = scmp.eq.s32.totalorder %s18, 0
      %p122 = por %p120, %p121
      %p123 = scmp.ne.s32.totalorder %s115, %s117
      %p124 = scmp.eq.s32.totalorder %s23, 1
      %p125 = por %p123, %p124
      %p126 = scmp.ne.s32.totalorder %s117, %s118
      %p127 = scmp.eq.s32.totalorder %s23, 0
      %p128 = por %p126, %p127
      %p129 = scmp.ne.s32.totalorder %s117, %s118
      %p130 = scmp.eq.s32.totalorder %s24, 1
      %p131 = por %p129, %p130
      %p133 = scmp.ne.s32.totalorder %s118, %s132
      %p134 = scmp.eq.s32.totalorder %s24, 0
      %p135 = por %p133, %p134
      %s136 = ssub.s32 %s18, %s25
      %p137 = scmp.eq.s32.totalorder %s136, 0
      %s139 = sadd.s32 %s138, 1
      %s140 = scalar_select %p137, %s138, %s139
      %p143 = pneg %p137
      %p144 = scmp.eq.s32.totalorder %s18, 1
      %p145 = por %p143, %p144
      %p146 = scmp.ne.s32.totalorder %s138, %s141
      %p147 = scmp.eq.s32.totalorder %s18, 0
      %p148 = por %p146, %p147
      %p149 = scmp.ne.s32.totalorder %s138, %s141
      %p150 = scmp.eq.s32.totalorder %s23, 1
      %p151 = por %p149, %p150
      %p152 = scmp.ne.s32.totalorder %s141, %s142
      %p153 = scmp.eq.s32.totalorder %s23, 0
      %p154 = por %p152, %p153
      %p155 = scmp.ne.s32.totalorder %s141, %s142
      %p156 = scmp.eq.s32.totalorder %s24, 1
      %p157 = por %p155, %p156
      %p159 = scmp.ne.s32.totalorder %s142, %s158
      %p160 = scmp.eq.s32.totalorder %s24, 0
      %p161 = por %p159, %p160
      %p162 = scmp.le.s32.totalorder 1, %s18
      %p163 = scmp.lt.s32.totalorder %s18, 3
      %p164 = pnand %p162, %p163
      %p165 = pneg %p164
      // Predicated region
      $region9: #{tpu_custom_call.1} parent=5 // pred_check
        _
      $region10: #{tpu_custom_call.1} parent=5 // pred_check_branch
        %167 = sbr.rel (%p164) target = $region12
      $region11: #{tpu_custom_call.1} parent=5 // pred_region
        %s168 = ssub.s32 %s18, 1
        // Predicated region
        $region13: #{tpu_custom_call.1} parent=11 // pred_check
          %p169 = pneg %p65
        $region14: #{tpu_custom_call.1} parent=11 // pred_check_branch
          %171 = sbr.rel (%p169) target = $region16
        $region15: #{tpu_custom_call.1} parent=11 // pred_region
          %s173 = ssub.s32 256, 256
          %174 = vsyncadd [#allocation6], %s173
          %s175 = sshll.u32 [#allocation5], 4
          %s176 = int_to_ptr.vmem [resolvable:$true] %s175
          %181 = dma.hbm_to_vmem [thread:$0]  %s1, 256, %s176, [#allocation6], 64, 64, 4
        $region16: #{tpu_custom_call.1} parent=11 // pred_fallthru
          _
        // Predicated region
        $region17: #{tpu_custom_call.1} parent=11 // pred_check
          %p182 = pneg %p86
        $region18: #{tpu_custom_call.1} parent=11 // pred_check_branch
          %184 = sbr.rel (%p182) target = $region20
        $region19: #{tpu_custom_call.1} parent=11 // pred_region
          _
        $region20: #{tpu_custom_call.1} parent=11 // pred_fallthru
          _
        // Predicated region
        $region21: #{tpu_custom_call.1} parent=11 // pred_check
          %p185 = pneg %p107
        $region22: #{tpu_custom_call.1} parent=11 // pred_check_branch
          %187 = sbr.rel (%p185) target = $region24
        $region23: #{tpu_custom_call.1} parent=11 // pred_region
          %s189 = ssub.s32 256, 256
          %190 = vsyncadd [#allocation6], %s189
          %s191 = sshll.u32 [#allocation7], 4
          %s192 = int_to_ptr.vmem [resolvable:$true] %s191
          %197 = dma.hbm_to_vmem [thread:$0]  %s3, 256, %s192, [#allocation6], 64, 64, 4
        $region24: #{tpu_custom_call.1} parent=11 // pred_fallthru
          _
        // Predicated region
        $region25: #{tpu_custom_call.1} parent=11 // pred_check
          %p198 = pneg %p128
        $region26: #{tpu_custom_call.1} parent=11 // pred_check_branch
          %200 = sbr.rel (%p198) target = $region28
        $region27: #{tpu_custom_call.1} parent=11 // pred_region
          _
        $region28: #{tpu_custom_call.1} parent=11 // pred_fallthru
          _
      $region12: #{tpu_custom_call.1} parent=5 // pred_fallthru
        _
      %p201 = scmp.lt.s32.totalorder %s18, 2
      // Predicated region
      $region29: #{tpu_custom_call.1} parent=5 // pred_check
        %p202 = pneg %p201
      $region30: #{tpu_custom_call.1} parent=5 // pred_check_branch
        %204 = sbr.rel (%p202) target = $region32
      $region31: #{tpu_custom_call.1} parent=5 // pred_region
        // Predicated region
        $region33: #{tpu_custom_call.1} parent=31 // pred_check
          %p205 = pneg %p38
        $region34: #{tpu_custom_call.1} parent=31 // pred_check_branch
          %207 = sbr.rel (%p205) target = $region36
        $region35: #{tpu_custom_call.1} parent=31 // pred_region
          %s208 = sand.u32 %s28, 1
          %s209 = scalar_lea.sflag [#allocation3], %s208
          %s210 = sand.u32 %s28, 1
          %s211 = smul.addr %s210, 4
          %s212 = scalar_lea.vmem [#allocation2], %s211
          %s214 = ssub.s32 64, 64
          %215 = vsyncadd %s209, %s214
          %s216 = smul.addr %s18, 64
          %s217 = scalar_lea.hbm %s0, %s216
          %s219 = sshll.u32 %s212, 4
          %s220 = int_to_ptr.vmem [resolvable:$true] %s219
          %222 = dma.hbm_to_vmem [thread:$0]  %s217, 64, %s220, %s209
        $region36: #{tpu_custom_call.1} parent=31 // pred_fallthru
          _
      $region32: #{tpu_custom_call.1} parent=5 // pred_fallthru
        _
      %p223 = scmp.le.s32.totalorder 1, %s18
      %p224 = scmp.lt.s32.totalorder %s18, 3
      %p225 = pnand %p223, %p224
      %p226 = pneg %p225
      // Predicated region
      $region37: #{tpu_custom_call.1} parent=5 // pred_check
        _
      $region38: #{tpu_custom_call.1} parent=5 // pred_check_branch
        %228 = sbr.rel (%p225) target = $region40
      $region39: #{tpu_custom_call.1} parent=5 // pred_region
        %s229 = ssub.s32 %s18, 1
        %s230 = sand.u32 %s31, 1
        %s231 = scalar_lea.sflag [#allocation3], %s230
        %s232 = sand.u32 %s31, 1
        %s233 = smul.addr %s232, 4
        %s234 = scalar_lea.vmem [#allocation2], %s233
        // Predicated region
        $region41: #{tpu_custom_call.1} parent=39 // pred_check
          %p235 = pneg %p44
        $region42: #{tpu_custom_call.1} parent=39 // pred_check_branch
          %237 = sbr.rel (%p235) target = $region44
        $region43: #{tpu_custom_call.1} parent=39 // pred_region
          %238 = dma.done %s231, 64
        $region44: #{tpu_custom_call.1} parent=39 // pred_fallthru
          _
        // Predicated region
        $region45: #{tpu_custom_call.1} parent=39 // pred_check
          %p239 = pneg %p65
        $region46: #{tpu_custom_call.1} parent=39 // pred_check_branch
          %241 = sbr.rel (%p239) target = $region48
        $region47: #{tpu_custom_call.1} parent=39 // pred_region
          %242 = dma.done [#allocation6], 256
        $region48: #{tpu_custom_call.1} parent=39 // pred_fallthru
          _
        // Predicated region
        $region49: #{tpu_custom_call.1} parent=39 // pred_check
          %p243 = pneg %p107
        $region50: #{tpu_custom_call.1} parent=39 // pred_check_branch
          %245 = sbr.rel (%p243) target = $region52
        $region51: #{tpu_custom_call.1} parent=39 // pred_region
          %246 = dma.done [#allocation6], 256
        $region52: #{tpu_custom_call.1} parent=39 // pred_fallthru
          _
        %s247 = sand.u32 %s31, 1
        %s248 = scalar_lea.sflag [#allocation3], %s247
        %s249 = sand.u32 %s31, 1
        %s250 = smul.addr %s249, 4
        %s251 = scalar_lea.vmem [#allocation2], %s250
        %p252 = pneg %p44
        %p253 = pneg %p41
        %p254 = pneg %p65
        %p255 = pneg %p62
        %p256 = pneg %p86
        %p257 = pneg %p83
        %p258 = pneg %p107
        %p259 = pneg %p104
        %p260 = pneg %p128
        %p261 = pneg %p125
        %p262 = pneg %p154
        %p263 = pneg %p151
        %s264 = sand.u32 %s141, 1
        %s265 = scalar_lea.sflag [#allocation4], %s264
        %s266 = sand.u32 %s141, 1
        %s267 = smul.addr %s266, 8
        %s268 = scalar_lea.vmem [#allocation8], %s267
        %v270 = vld [vmem:[%s234] sm:$0xf]
        %v271 = vld [vmem:[#allocation5] sm:$0xf]
        %v272 = vld [vmem:[#allocation5 + $0x4] sm:$0xf]
        %v273 = vld [vmem:[#allocation5 + $0x8] sm:$0xf]
        %v274 = vld [vmem:[#allocation5 + $0xc] sm:$0xf]
        %v275 = vld [vmem:[%s2] sm:$0x1]
        %v277 = vlaneseq
        %v278 = vshrl.u32 %v277, 7
        %v279 = vsub.s32 0, %v278
        %v280 = vrot.slane %v275, %v279
        %v286 = vunpack.c.l.b16 %v271
        %v287 = vunpack.c.l.b16 %v272
        %v288 = vunpack.c.l.b16 %v273
        %v289 = vunpack.c.l.b16 %v274
        %v290 = vpack.c.b16 %v287, %v286
        %v291 = vpack.c.b16 %v289, %v288
        %vm294 = vcmask 261120
        %v296 = vsel %vm294, %v270, 0
        %298 = vmatprep.subr.bf16.mxu0 0
        %299 = vmatpush1.bf16.msra.mxu0 %v290
        %300 = vmatprep.subr.bf16.mxu0 0
        %301 = vmatpush1.bf16.msra.mxu0 %v291
        %302 = vmatprep.subr.bf16.mxu0 0
        %303 = vmatpush1.bf16.msra.mxu0 0
        %304 = vmatprep.subr.bf16.mxu0 0
        %305 = vmatpush1.bf16.msra.mxu0 0
        %306 = vmatprep.subr.bf16.mxu0 0
        %307 = vmatpush1.bf16.msra.mxu0 0
        %308 = vmatprep.subr.bf16.mxu0 0
        %309 = vmatpush1.bf16.msra.mxu0 0
        %310 = vmatprep.subr.bf16.mxu0 0
        %311 = vmatpush1.bf16.msra.mxu0 0
        %312 = vmatprep.subr.bf16.mxu0 0
        %313 = vmatpush1.bf16.msra.mxu0 0
        %314 = vmatprep.subr.bf16.mxu0 0
        %315 = vmatpush1.bf16.msra.mxu0 0
        %316 = vmatprep.subr.bf16.mxu0 0
        %317 = vmatpush1.bf16.msra.mxu0 0
        %318 = vmatprep.subr.bf16.mxu0 0
        %319 = vmatpush1.bf16.msra.mxu0 0
        %320 = vmatprep.subr.bf16.mxu0 0
        %321 = vmatpush1.bf16.msra.mxu0 0
        %322 = vmatprep.subr.bf16.mxu0 0
        %323 = vmatpush1.bf16.msra.mxu0 0
        %324 = vmatprep.subr.bf16.mxu0 0
        %325 = vmatpush1.bf16.msra.mxu0 0
        %326 = vmatprep.subr.bf16.mxu0 0
        %327 = vmatpush1.bf16.msra.mxu0 0
        %328 = vmatprep.subr.bf16.mxu0 0
        %329 = vmatpush1.bf16.msra.mxu0 0
        %330 = vmatprep.mubr.bf16.mxu0 0
        %331 = vmatmul.mubr.bf16.gmra.mrb[0].mxu0 %v296
        %v332 = vpop.f32.mrb[0].mxu0
        %v333 = vadd.f32 %v280, %v332
        %v334 = vpop.f32.mrb[0].mxu0
        %v335 = vpop.f32.mrb[0].mxu0
        %v336 = vpop.f32.mrb[0].mxu0
        %337 = vdwg.mxu0
        %339 = vrot.lane.b32.xlu0 %v333, 120
        %v340 = vpop.permute.xlu0 %339
        %342 = vrot.lane.b32.xlu0 %v333, 112
        %v343 = vpop.permute.xlu0 %342
        %345 = vrot.lane.b32.xlu0 %v333, 104
        %v346 = vpop.permute.xlu0 %345
        %v348 = vcombine.low %v333, %v343
        %v349 = vcombine.high %v333, %v343
        %v351 = vunpack.c.l.s4 1983009808
        %v352 = vunpack.c.0.s8 %v351
        %v353 = vlaneseq
        %v354 = vshrl.u32 %v353, 7
        %v355 = vsub.s32 %v352, %v354
        %v356 = vrot.slane %v348, %v355
        %v358 = vunpack.c.l.s4 1983009808
        %v359 = vunpack.c.0.s8 %v358
        %v360 = vlaneseq
        %v361 = vshrl.u32 %v360, 7
        %v362 = vsub.s32 %v359, %v361
        %v363 = vrot.slane %v349, %v362
        %v364 = vcombine.low %v340, %v346
        %v365 = vcombine.high %v340, %v346
        %v367 = vunpack.c.l.s4 1983009808
        %v368 = vunpack.c.0.s8 %v367
        %v369 = vlaneseq
        %v370 = vshrl.u32 %v369, 7
        %v371 = vsub.s32 %v368, %v370
        %v372 = vrot.slane %v364, %v371
        %v374 = vunpack.c.l.s4 1983009808
        %v375 = vunpack.c.0.s8 %v374
        %v376 = vlaneseq
        %v377 = vshrl.u32 %v376, 7
        %v378 = vsub.s32 %v375, %v377
        %v379 = vrot.slane %v365, %v378
        %v380 = vcombine.low %v356, %v372
        %v381 = vcombine.high %v356, %v372
        %v383 = vunpack.c.l.s4 1934713408
        %v384 = vunpack.c.0.s8 %v383
        %v385 = vlaneseq
        %v386 = vshrl.u32 %v385, 7
        %v387 = vsub.s32 %v384, %v386
        %v388 = vrot.slane %v380, %v387
        %v390 = vunpack.c.l.s4 1934713408
        %v391 = vunpack.c.0.s8 %v390
        %v392 = vlaneseq
        %v393 = vshrl.u32 %v392, 7
        %v394 = vsub.s32 %v391, %v393
        %v395 = vrot.slane %v381, %v394
        %v396 = vcombine.low %v363, %v379
        %v397 = vcombine.high %v363, %v379
        %v399 = vunpack.c.l.s4 1934713408
        %v400 = vunpack.c.0.s8 %v399
        %v401 = vlaneseq
        %v402 = vshrl.u32 %v401, 7
        %v403 = vsub.s32 %v400, %v402
        %v404 = vrot.slane %v396, %v403
        %v406 = vunpack.c.l.s4 1934713408
        %v407 = vunpack.c.0.s8 %v406
        %v408 = vlaneseq
        %v409 = vshrl.u32 %v408, 7
        %v410 = vsub.s32 %v407, %v409
        %v411 = vrot.slane %v397, %v410
        %v412 = vcombine.high %v388, 0.0
        %v413 = vcombine.high %v395, 0.0
        %v414 = vcombine.high %v404, 0.0
        %v415 = vcombine.high %v411, 0.0
        %v416 = vcombine.low %v388, %v395
        %v418 = vunpack.c.l.s4 1983009808
        %v419 = vunpack.c.0.s8 %v418
        %v420 = vlaneseq
        %v421 = vshrl.u32 %v420, 7
        %v422 = vsub.s32 %v419, %v421
        %v423 = vrot.slane %v416, %v422
        %v424 = vcombine.low %v412, %v413
        %v426 = vunpack.c.l.s4 1983009808
        %v427 = vunpack.c.0.s8 %v426
        %v428 = vlaneseq
        %v429 = vshrl.u32 %v428, 7
        %v430 = vsub.s32 %v427, %v429
        %v431 = vrot.slane %v424, %v430
        %v432 = vcombine.low %v404, %v411
        %v434 = vunpack.c.l.s4 1983009808
        %v435 = vunpack.c.0.s8 %v434
        %v436 = vlaneseq
        %v437 = vshrl.u32 %v436, 7
        %v438 = vsub.s32 %v435, %v437
        %v439 = vrot.slane %v432, %v438
        %v440 = vcombine.low %v414, %v415
        %v442 = vunpack.c.l.s4 1983009808
        %v443 = vunpack.c.0.s8 %v442
        %v444 = vlaneseq
        %v445 = vshrl.u32 %v444, 7
        %v446 = vsub.s32 %v443, %v445
        %v447 = vrot.slane %v440, %v446
        %v448 = vcombine.low %v423, %v431
        %v449 = vcombine.high %v423, %v431
        %v451 = vunpack.c.l.s4 1934713408
        %v452 = vunpack.c.0.s8 %v451
        %v453 = vlaneseq
        %v454 = vshrl.u32 %v453, 7
        %v455 = vsub.s32 %v452, %v454
        %v456 = vrot.slane %v448, %v455
        %v458 = vunpack.c.l.s4 1934713408
        %v459 = vunpack.c.0.s8 %v458
        %v460 = vlaneseq
        %v461 = vshrl.u32 %v460, 7
        %v462 = vsub.s32 %v459, %v461
        %v463 = vrot.slane %v449, %v462
        %v464 = vcombine.low %v439, %v447
        %v465 = vcombine.high %v439, %v447
        %v467 = vunpack.c.l.s4 1934713408
        %v468 = vunpack.c.0.s8 %v467
        %v469 = vlaneseq
        %v470 = vshrl.u32 %v469, 7
        %v471 = vsub.s32 %v468, %v470
        %v472 = vrot.slane %v464, %v471
        %v474 = vunpack.c.l.s4 1934713408
        %v475 = vunpack.c.0.s8 %v474
        %v476 = vlaneseq
        %v477 = vshrl.u32 %v476, 7
        %v478 = vsub.s32 %v475, %v477
        %v479 = vrot.slane %v465, %v478
        %v480 = vcombine.low %v456, %v472
        %v481 = vcombine.high %v456, %v472
        %v482 = vcombine.low %v463, %v479
        %v483 = vcombine.high %v463, %v479
        %v484 = vpack.c.bf16 %v480, %v480
        %v485 = vpack.c.bf16 %v481, %v481
        %v486 = vpack.c.bf16 %v482, %v482
        %v487 = vpack.c.bf16 %v483, %v483
        %488 = vrot.lane.b32.xlu0 %v333, 96
        %v489 = vpop.permute.xlu0 %488
        %490 = vrot.lane.b32.xlu0 %v340, 96
        %v491 = vpop.permute.xlu0 %490
        %492 = vrot.lane.b32.xlu0 %v343, 96
        %v493 = vpop.permute.xlu0 %492
        %494 = vrot.lane.b32.xlu0 %v346, 96
        %v495 = vpop.permute.xlu0 %494
        %v500 = vcombine.low %v489, %v493
        %v501 = vcombine.high %v489, %v493
        %v503 = vunpack.c.l.s4 1983009808
        %v504 = vunpack.c.0.s8 %v503
        %v505 = vlaneseq
        %v506 = vshrl.u32 %v505, 7
        %v507 = vsub.s32 %v504, %v506
        %v508 = vrot.slane %v500, %v507
        %v510 = vunpack.c.l.s4 1983009808
        %v511 = vunpack.c.0.s8 %v510
        %v512 = vlaneseq
        %v513 = vshrl.u32 %v512, 7
        %v514 = vsub.s32 %v511, %v513
        %v515 = vrot.slane %v501, %v514
        %v516 = vcombine.low %v491, %v495
        %v517 = vcombine.high %v491, %v495
        %v519 = vunpack.c.l.s4 1983009808
        %v520 = vunpack.c.0.s8 %v519
        %v521 = vlaneseq
        %v522 = vshrl.u32 %v521, 7
        %v523 = vsub.s32 %v520, %v522
        %v524 = vrot.slane %v516, %v523
        %v526 = vunpack.c.l.s4 1983009808
        %v527 = vunpack.c.0.s8 %v526
        %v528 = vlaneseq
        %v529 = vshrl.u32 %v528, 7
        %v530 = vsub.s32 %v527, %v529
        %v531 = vrot.slane %v517, %v530
        %v532 = vcombine.low %v508, %v524
        %v533 = vcombine.high %v508, %v524
        %v535 = vunpack.c.l.s4 1934713408
        %v536 = vunpack.c.0.s8 %v535
        %v537 = vlaneseq
        %v538 = vshrl.u32 %v537, 7
        %v539 = vsub.s32 %v536, %v538
        %v540 = vrot.slane %v532, %v539
        %v542 = vunpack.c.l.s4 1934713408
        %v543 = vunpack.c.0.s8 %v542
        %v544 = vlaneseq
        %v545 = vshrl.u32 %v544, 7
        %v546 = vsub.s32 %v543, %v545
        %v547 = vrot.slane %v533, %v546
        %v548 = vcombine.low %v515, %v531
        %v549 = vcombine.high %v515, %v531
        %v551 = vunpack.c.l.s4 1934713408
        %v552 = vunpack.c.0.s8 %v551
        %v553 = vlaneseq
        %v554 = vshrl.u32 %v553, 7
        %v555 = vsub.s32 %v552, %v554
        %v556 = vrot.slane %v548, %v555
        %v558 = vunpack.c.l.s4 1934713408
        %v559 = vunpack.c.0.s8 %v558
        %v560 = vlaneseq
        %v561 = vshrl.u32 %v560, 7
        %v562 = vsub.s32 %v559, %v561
        %v563 = vrot.slane %v549, %v562
        %v564 = vcombine.high %v540, 0.0
        %v565 = vcombine.high %v547, 0.0
        %v566 = vcombine.high %v556, 0.0
        %v567 = vcombine.high %v563, 0.0
        %v568 = vcombine.low %v540, %v547
        %v570 = vunpack.c.l.s4 1983009808
        %v571 = vunpack.c.0.s8 %v570
        %v572 = vlaneseq
        %v573 = vshrl.u32 %v572, 7
        %v574 = vsub.s32 %v571, %v573
        %v575 = vrot.slane %v568, %v574
        %v576 = vcombine.low %v564, %v565
        %v578 = vunpack.c.l.s4 1983009808
        %v579 = vunpack.c.0.s8 %v578
        %v580 = vlaneseq
        %v581 = vshrl.u32 %v580, 7
        %v582 = vsub.s32 %v579, %v581
        %v583 = vrot.slane %v576, %v582
        %v584 = vcombine.low %v556, %v563
        %v586 = vunpack.c.l.s4 1983009808
        %v587 = vunpack.c.0.s8 %v586
        %v588 = vlaneseq
        %v589 = vshrl.u32 %v588, 7
        %v590 = vsub.s32 %v587, %v589
        %v591 = vrot.slane %v584, %v590
        %v592 = vcombine.low %v566, %v567
        %v594 = vunpack.c.l.s4 1983009808
        %v595 = vunpack.c.0.s8 %v594
        %v596 = vlaneseq
        %v597 = vshrl.u32 %v596, 7
        %v598 = vsub.s32 %v595, %v597
        %v599 = vrot.slane %v592, %v598
        %v600 = vcombine.low %v575, %v583
        %v601 = vcombine.high %v575, %v583
        %v603 = vunpack.c.l.s4 1934713408
        %v604 = vunpack.c.0.s8 %v603
        %v605 = vlaneseq
        %v606 = vshrl.u32 %v605, 7
        %v607 = vsub.s32 %v604, %v606
        %v608 = vrot.slane %v600, %v607
        %v610 = vunpack.c.l.s4 1934713408
        %v611 = vunpack.c.0.s8 %v610
        %v612 = vlaneseq
        %v613 = vshrl.u32 %v612, 7
        %v614 = vsub.s32 %v611, %v613
        %v615 = vrot.slane %v601, %v614
        %v616 = vcombine.low %v591, %v599
        %v617 = vcombine.high %v591, %v599
        %v619 = vunpack.c.l.s4 1934713408
        %v620 = vunpack.c.0.s8 %v619
        %v621 = vlaneseq
        %v622 = vshrl.u32 %v621, 7
        %v623 = vsub.s32 %v620, %v622
        %v624 = vrot.slane %v616, %v623
        %v626 = vunpack.c.l.s4 1934713408
        %v627 = vunpack.c.0.s8 %v626
        %v628 = vlaneseq
        %v629 = vshrl.u32 %v628, 7
        %v630 = vsub.s32 %v627, %v629
        %v631 = vrot.slane %v617, %v630
        %v632 = vcombine.low %v608, %v624
        %v633 = vcombine.high %v608, %v624
        %v634 = vcombine.low %v615, %v631
        %v635 = vcombine.high %v615, %v631
        %v636 = vpack.c.bf16 %v632, %v632
        %v637 = vpack.c.bf16 %v633, %v633
        %v638 = vpack.c.bf16 %v634, %v634
        %v639 = vpack.c.bf16 %v635, %v635
        %640 = vrot.lane.b32.xlu0 %v333, 64
        %v641 = vpop.permute.xlu0 %640
        %642 = vrot.lane.b32.xlu0 %v340, 64
        %v643 = vpop.permute.xlu0 %642
        %644 = vrot.lane.b32.xlu0 %v343, 64
        %v645 = vpop.permute.xlu0 %644
        %646 = vrot.lane.b32.xlu0 %v346, 64
        %v647 = vpop.permute.xlu0 %646
        %v652 = vcombine.low %v641, %v645
        %v653 = vcombine.high %v641, %v645
        %v655 = vunpack.c.l.s4 1983009808
        %v656 = vunpack.c.0.s8 %v655
        %v657 = vlaneseq
        %v658 = vshrl.u32 %v657, 7
        %v659 = vsub.s32 %v656, %v658
        %v660 = vrot.slane %v652, %v659
        %v662 = vunpack.c.l.s4 1983009808
        %v663 = vunpack.c.0.s8 %v662
        %v664 = vlaneseq
        %v665 = vshrl.u32 %v664, 7
        %v666 = vsub.s32 %v663, %v665
        %v667 = vrot.slane %v653, %v666
        %v668 = vcombine.low %v643, %v647
        %v669 = vcombine.high %v643, %v647
        %v671 = vunpack.c.l.s4 1983009808
        %v672 = vunpack.c.0.s8 %v671
        %v673 = vlaneseq
        %v674 = vshrl.u32 %v673, 7
        %v675 = vsub.s32 %v672, %v674
        %v676 = vrot.slane %v668, %v675
        %v678 = vunpack.c.l.s4 1983009808
        %v679 = vunpack.c.0.s8 %v678
        %v680 = vlaneseq
        %v681 = vshrl.u32 %v680, 7
        %v682 = vsub.s32 %v679, %v681
        %v683 = vrot.slane %v669, %v682
        %v684 = vcombine.low %v660, %v676
        %v685 = vcombine.high %v660, %v676
        %v687 = vunpack.c.l.s4 1934713408
        %v688 = vunpack.c.0.s8 %v687
        %v689 = vlaneseq
        %v690 = vshrl.u32 %v689, 7
        %v691 = vsub.s32 %v688, %v690
        %v692 = vrot.slane %v684, %v691
        %v694 = vunpack.c.l.s4 1934713408
        %v695 = vunpack.c.0.s8 %v694
        %v696 = vlaneseq
        %v697 = vshrl.u32 %v696, 7
        %v698 = vsub.s32 %v695, %v697
        %v699 = vrot.slane %v685, %v698
        %v700 = vcombine.low %v667, %v683
        %v701 = vcombine.high %v667, %v683
        %v703 = vunpack.c.l.s4 1934713408
        %v704 = vunpack.c.0.s8 %v703
        %v705 = vlaneseq
        %v706 = vshrl.u32 %v705, 7
        %v707 = vsub.s32 %v704, %v706
        %v708 = vrot.slane %v700, %v707
        %v710 = vunpack.c.l.s4 1934713408
        %v711 = vunpack.c.0.s8 %v710
        %v712 = vlaneseq
        %v713 = vshrl.u32 %v712, 7
        %v714 = vsub.s32 %v711, %v713
        %v715 = vrot.slane %v701, %v714
        %v716 = vcombine.high %v692, 0.0
        %v717 = vcombine.high %v699, 0.0
        %v718 = vcombine.high %v708, 0.0
        %v719 = vcombine.high %v715, 0.0
        %v720 = vcombine.low %v692, %v699
        %v722 = vunpack.c.l.s4 1983009808
        %v723 = vunpack.c.0.s8 %v722
        %v724 = vlaneseq
        %v725 = vshrl.u32 %v724, 7
        %v726 = vsub.s32 %v723, %v725
        %v727 = vrot.slane %v720, %v726
        %v728 = vcombine.low %v716, %v717
        %v730 = vunpack.c.l.s4 1983009808
        %v731 = vunpack.c.0.s8 %v730
        %v732 = vlaneseq
        %v733 = vshrl.u32 %v732, 7
        %v734 = vsub.s32 %v731, %v733
        %v735 = vrot.slane %v728, %v734
        %v736 = vcombine.low %v708, %v715
        %v738 = vunpack.c.l.s4 1983009808
        %v739 = vunpack.c.0.s8 %v738
        %v740 = vlaneseq
        %v741 = vshrl.u32 %v740, 7
        %v742 = vsub.s32 %v739, %v741
        %v743 = vrot.slane %v736, %v742
        %v744 = vcombine.low %v718, %v719
        %v746 = vunpack.c.l.s4 1983009808
        %v747 = vunpack.c.0.s8 %v746
        %v748 = vlaneseq
        %v749 = vshrl.u32 %v748, 7
        %v750 = vsub.s32 %v747, %v749
        %v751 = vrot.slane %v744, %v750
        %v752 = vcombine.low %v727, %v735
        %v753 = vcombine.high %v727, %v735
        %v755 = vunpack.c.l.s4 1934713408
        %v756 = vunpack.c.0.s8 %v755
        %v757 = vlaneseq
        %v758 = vshrl.u32 %v757, 7
        %v759 = vsub.s32 %v756, %v758
        %v760 = vrot.slane %v752, %v759
        %v762 = vunpack.c.l.s4 1934713408
        %v763 = vunpack.c.0.s8 %v762
        %v764 = vlaneseq
        %v765 = vshrl.u32 %v764, 7
        %v766 = vsub.s32 %v763, %v765
        %v767 = vrot.slane %v753, %v766
        %v768 = vcombine.low %v743, %v751
        %v769 = vcombine.high %v743, %v751
        %v771 = vunpack.c.l.s4 1934713408
        %v772 = vunpack.c.0.s8 %v771
        %v773 = vlaneseq
        %v774 = vshrl.u32 %v773, 7
        %v775 = vsub.s32 %v772, %v774
        %v776 = vrot.slane %v768, %v775
        %v778 = vunpack.c.l.s4 1934713408
        %v779 = vunpack.c.0.s8 %v778
        %v780 = vlaneseq
        %v781 = vshrl.u32 %v780, 7
        %v782 = vsub.s32 %v779, %v781
        %v783 = vrot.slane %v769, %v782
        %v784 = vcombine.low %v760, %v776
        %v785 = vcombine.high %v760, %v776
        %v786 = vcombine.low %v767, %v783
        %v787 = vcombine.high %v767, %v783
        %v788 = vpack.c.bf16 %v784, %v784
        %v789 = vpack.c.bf16 %v785, %v785
        %v790 = vpack.c.bf16 %v786, %v786
        %v791 = vpack.c.bf16 %v787, %v787
        %vm792 = vcmask 64512
        %v794 = vsel %vm792, %v484, 0
        %v797 = vsel %vm792, %v636, 0
        %799 = vmatprep.subr.bf16.mxu0 0
        %800 = vmatpush1.bf16.xpose.msra.mxu0 %v797
        %801 = vmatprep.subr.bf16.mxu0 0
        %802 = vmatpush1.bf16.xpose.msra.mxu0 0
        %803 = vmatprep.subr.bf16.mxu0 0
        %804 = vmatpush1.bf16.xpose.msra.mxu0 0
        %805 = vmatprep.subr.bf16.mxu0 0
        %806 = vmatpush1.bf16.xpose.msra.mxu0 0
        %807 = vmatprep.subr.bf16.mxu0 0
        %808 = vmatpush1.bf16.xpose.msra.mxu0 0
        %809 = vmatprep.subr.bf16.mxu0 0
        %810 = vmatpush1.bf16.xpose.msra.mxu0 0
        %811 = vmatprep.subr.bf16.mxu0 0
        %812 = vmatpush1.bf16.xpose.msra.mxu0 0
        %813 = vmatprep.subr.bf16.mxu0 0
        %814 = vmatpush1.bf16.xpose.msra.mxu0 0
        %815 = vmatprep.subr.bf16.mxu0 0
        %816 = vmatpush1.bf16.xpose.msra.mxu0 0
        %817 = vmatprep.subr.bf16.mxu0 0
        %818 = vmatpush1.bf16.xpose.msra.mxu0 0
        %819 = vmatprep.subr.bf16.mxu0 0
        %820 = vmatpush1.bf16.xpose.msra.mxu0 0
        %821 = vmatprep.subr.bf16.mxu0 0
        %822 = vmatpush1.bf16.xpose.msra.mxu0 0
        %823 = vmatprep.subr.bf16.mxu0 0
        %824 = vmatpush1.bf16.xpose.msra.mxu0 0
        %825 = vmatprep.subr.bf16.mxu0 0
        %826 = vmatpush1.bf16.xpose.msra.mxu0 0
        %827 = vmatprep.subr.bf16.mxu0 0
        %828 = vmatpush1.bf16.xpose.msra.mxu0 0
        %829 = vmatprep.subr.bf16.mxu0 0
        %830 = vmatpush1.bf16.xpose.msra.mxu0 0
        %831 = vmatprep.mubr.bf16.mxu0 0
        %832 = vmatmul.mubr.bf16.gmra.mrb[0].mxu0 %v794
        %v833 = vpop.f32.mrb[0].mxu0
        %v834 = vadd.f32 0.0, %v833
        %v835 = vpop.f32.mrb[0].mxu0
        %v836 = vpop.f32.mrb[0].mxu0
        %v837 = vpop.f32.mrb[0].mxu0
        %838 = vdwg.mxu0
        %v840 = vsel %vm792, %v485, 0
        %v843 = vsel %vm792, %v637, 0
        %845 = vmatprep.subr.bf16.mxu0 0
        %846 = vmatpush1.bf16.xpose.msra.mxu0 %v843
        %847 = vmatprep.subr.bf16.mxu0 0
        %848 = vmatpush1.bf16.xpose.msra.mxu0 0
        %849 = vmatprep.subr.bf16.mxu0 0
        %850 = vmatpush1.bf16.xpose.msra.mxu0 0
        %851 = vmatprep.subr.bf16.mxu0 0
        %852 = vmatpush1.bf16.xpose.msra.mxu0 0
        %853 = vmatprep.subr.bf16.mxu0 0
        %854 = vmatpush1.bf16.xpose.msra.mxu0 0
        %855 = vmatprep.subr.bf16.mxu0 0
        %856 = vmatpush1.bf16.xpose.msra.mxu0 0
        %857 = vmatprep.subr.bf16.mxu0 0
        %858 = vmatpush1.bf16.xpose.msra.mxu0 0
        %859 = vmatprep.subr.bf16.mxu0 0
        %860 = vmatpush1.bf16.xpose.msra.mxu0 0
        %861 = vmatprep.subr.bf16.mxu0 0
        %862 = vmatpush1.bf16.xpose.msra.mxu0 0
        %863 = vmatprep.subr.bf16.mxu0 0
        %864 = vmatpush1.bf16.xpose.msra.mxu0 0
        %865 = vmatprep.subr.bf16.mxu0 0
        %866 = vmatpush1.bf16.xpose.msra.mxu0 0
        %867 = vmatprep.subr.bf16.mxu0 0
        %868 = vmatpush1.bf16.xpose.msra.mxu0 0
        %869 = vmatprep.subr.bf16.mxu0 0
        %870 = vmatpush1.bf16.xpose.msra.mxu0 0
        %871 = vmatprep.subr.bf16.mxu0 0
        %872 = vmatpush1.bf16.xpose.msra.mxu0 0
        %873 = vmatprep.subr.bf16.mxu0 0
        %874 = vmatpush1.bf16.xpose.msra.mxu0 0
        %875 = vmatprep.subr.bf16.mxu0 0
        %876 = vmatpush1.bf16.xpose.msra.mxu0 0
        %877 = vmatprep.mubr.bf16.mxu0 0
        %878 = vmatmul.mubr.bf16.gmra.mrb[0].mxu0 %v840
        %v879 = vpop.f32.mrb[0].mxu0
        %v880 = vadd.f32 0.0, %v879
        %v881 = vpop.f32.mrb[0].mxu0
        %v882 = vpop.f32.mrb[0].mxu0
        %v883 = vpop.f32.mrb[0].mxu0
        %884 = vdwg.mxu0
        %v886 = vsel %vm792, %v486, 0
        %v889 = vsel %vm792, %v638, 0
        %891 = vmatprep.subr.bf16.mxu0 0
        %892 = vmatpush1.bf16.xpose.msra.mxu0 %v889
        %893 = vmatprep.subr.bf16.mxu0 0
        %894 = vmatpush1.bf16.xpose.msra.mxu0 0
        %895 = vmatprep.subr.bf16.mxu0 0
        %896 = vmatpush1.bf16.xpose.msra.mxu0 0
        %897 = vmatprep.subr.bf16.mxu0 0
        %898 = vmatpush1.bf16.xpose.msra.mxu0 0
        %899 = vmatprep.subr.bf16.mxu0 0
        %900 = vmatpush1.bf16.xpose.msra.mxu0 0
        %901 = vmatprep.subr.bf16.mxu0 0
        %902 = vmatpush1.bf16.xpose.msra.mxu0 0
        %903 = vmatprep.subr.bf16.mxu0 0
        %904 = vmatpush1.bf16.xpose.msra.mxu0 0
        %905 = vmatprep.subr.bf16.mxu0 0
        %906 = vmatpush1.bf16.xpose.msra.mxu0 0
        %907 = vmatprep.subr.bf16.mxu0 0
        %908 = vmatpush1.bf16.xpose.msra.mxu0 0
        %909 = vmatprep.subr.bf16.mxu0 0
        %910 = vmatpush1.bf16.xpose.msra.mxu0 0
        %911 = vmatprep.subr.bf16.mxu0 0
        %912 = vmatpush1.bf16.xpose.msra.mxu0 0
        %913 = vmatprep.subr.bf16.mxu0 0
        %914 = vmatpush1.bf16.xpose.msra.mxu0 0
        %915 = vmatprep.subr.bf16.mxu0 0
        %916 = vmatpush1.bf16.xpose.msra.mxu0 0
        %917 = vmatprep.subr.bf16.mxu0 0
        %918 = vmatpush1.bf16.xpose.msra.mxu0 0
        %919 = vmatprep.subr.bf16.mxu0 0
        %920 = vmatpush1.bf16.xpose.msra.mxu0 0
        %921 = vmatprep.subr.bf16.mxu0 0
        %922 = vmatpush1.bf16.xpose.msra.mxu0 0
        %923 = vmatprep.mubr.bf16.mxu0 0
        %924 = vmatmul.mubr.bf16.gmra.mrb[0].mxu0 %v886
        %v925 = vpop.f32.mrb[0].mxu0
        %v926 = vadd.f32 0.0, %v925
        %v927 = vpop.f32.mrb[0].mxu0
        %v928 = vpop.f32.mrb[0].mxu0
        %v929 = vpop.f32.mrb[0].mxu0
        %930 = vdwg.mxu0
        %v932 = vsel %vm792, %v487, 0
        %v935 = vsel %vm792, %v639, 0
        %937 = vmatprep.subr.bf16.mxu0 0
        %938 = vmatpush1.bf16.xpose.msra.mxu0 %v935
        %939 = vmatprep.subr.bf16.mxu0 0
        %940 = vmatpush1.bf16.xpose.msra.mxu0 0
        %941 = vmatprep.subr.bf16.mxu0 0
        %942 = vmatpush1.bf16.xpose.msra.mxu0 0
        %943 = vmatprep.subr.bf16.mxu0 0
        %944 = vmatpush1.bf16.xpose.msra.mxu0 0
        %945 = vmatprep.subr.bf16.mxu0 0
        %946 = vmatpush1.bf16.xpose.msra.mxu0 0
        %947 = vmatprep.subr.bf16.mxu0 0
        %948 = vmatpush1.bf16.xpose.msra.mxu0 0
        %949 = vmatprep.subr.bf16.mxu0 0
        %950 = vmatpush1.bf16.xpose.msra.mxu0 0
        %951 = vmatprep.subr.bf16.mxu0 0
        %952 = vmatpush1.bf16.xpose.msra.mxu0 0
        %953 = vmatprep.subr.bf16.mxu0 0
        %954 = vmatpush1.bf16.xpose.msra.mxu0 0
        %955 = vmatprep.subr.bf16.mxu0 0
        %956 = vmatpush1.bf16.xpose.msra.mxu0 0
        %957 = vmatprep.subr.bf16.mxu0 0
        %958 = vmatpush1.bf16.xpose.msra.mxu0 0
        %959 = vmatprep.subr.bf16.mxu0 0
        %960 = vmatpush1.bf16.xpose.msra.mxu0 0
        %961 = vmatprep.subr.bf16.mxu0 0
        %962 = vmatpush1.bf16.xpose.msra.mxu0 0
        %963 = vmatprep.subr.bf16.mxu0 0
        %964 = vmatpush1.bf16.xpose.msra.mxu0 0
        %965 = vmatprep.subr.bf16.mxu0 0
        %966 = vmatpush1.bf16.xpose.msra.mxu0 0
        %967 = vmatprep.subr.bf16.mxu0 0
        %968 = vmatpush1.bf16.xpose.msra.mxu0 0
        %969 = vmatprep.mubr.bf16.mxu0 0
        %970 = vmatmul.mubr.bf16.gmra.mrb[0].mxu0 %v932
        %v971 = vpop.f32.mrb[0].mxu0
        %v972 = vadd.f32 0.0, %v971
        %v973 = vpop.f32.mrb[0].mxu0
        %v974 = vpop.f32.mrb[0].mxu0
        %v975 = vpop.f32.mrb[0].mxu0
        %976 = vdwg.mxu0
        %v977 = vsel %vm792, %v834, -inf
        %978 = vmax.xlane.f32.xlu0 %v977
        %v979 = vpop.xlane.xlu0 %978
        %v980 = vsel %vm792, %v880, -inf
        %981 = vmax.xlane.f32.xlu0 %v980
        %v982 = vpop.xlane.xlu0 %981
        %v983 = vsel %vm792, %v926, -inf
        %984 = vmax.xlane.f32.xlu0 %v983
        %v985 = vpop.xlane.xlu0 %984
        %v986 = vsel %vm792, %v972, -inf
        %987 = vmax.xlane.f32.xlu0 %v986
        %v988 = vpop.xlane.xlu0 %987
        %v989 = vsub.f32 %v834, %v979
        %v990 = vsub.f32 %v880, %v982
        %v991 = vsub.f32 %v926, %v985
        %v992 = vsub.f32 %v972, %v988
        %v993 = vmul.f32 %v989, 1.442695
        %v994 = vpow.pop %v993
        %v995 = vmul.f32 %v990, 1.442695
        %v996 = vpow.pop %v995
        %v997 = vmul.f32 %v991, 1.442695
        %v998 = vpow.pop %v997
        %v999 = vmul.f32 %v992, 1.442695
        %v1000 = vpow.pop %v999
        %v1001 = vsel %vm792, %v994, 0.0
        %1002 = vadd.xlane.f32.xlu0 %v1001
        %v1003 = vpop.xlane.xlu0 %1002
        %v1004 = vsel %vm792, %v996, 0.0
        %1005 = vadd.xlane.f32.xlu0 %v1004
        %v1006 = vpop.xlane.xlu0 %1005
        %v1007 = vsel %vm792, %v998, 0.0
        %1008 = vadd.xlane.f32.xlu0 %v1007
        %v1009 = vpop.xlane.xlu0 %1008
        %v1010 = vsel %vm792, %v1000, 0.0
        %1011 = vadd.xlane.f32.xlu0 %v1010
        %v1012 = vpop.xlane.xlu0 %1011
        %v1013 = vpack.c.bf16 %v994, %v994
        %v1014 = vpack.c.bf16 %v996, %v996
        %v1015 = vpack.c.bf16 %v998, %v998
        %v1016 = vpack.c.bf16 %v1000, %v1000
        %v1018 = vsel %vm792, %v1013, 0
        %vm1020 = vcmask 1043456
        %v1022 = vsel %vm1020, %v788, 0
        %1024 = vmatprep.subr.bf16.mxu0 0
        %1025 = vmatpush1.bf16.msra.mxu0 %v1022
        %1026 = vmatprep.subr.bf16.mxu0 0
        %1027 = vmatpush1.bf16.msra.mxu0 0
        %1028 = vmatprep.subr.bf16.mxu0 0
        %1029 = vmatpush1.bf16.msra.mxu0 0
        %1030 = vmatprep.subr.bf16.mxu0 0
        %1031 = vmatpush1.bf16.msra.mxu0 0
        %1032 = vmatprep.subr.bf16.mxu0 0
        %1033 = vmatpush1.bf16.msra.mxu0 0
        %1034 = vmatprep.subr.bf16.mxu0 0
        %1035 = vmatpush1.bf16.msra.mxu0 0
        %1036 = vmatprep.subr.bf16.mxu0 0
        %1037 = vmatpush1.bf16.msra.mxu0 0
        %1038 = vmatprep.subr.bf16.mxu0 0
        %1039 = vmatpush1.bf16.msra.mxu0 0
        %1040 = vmatprep.subr.bf16.mxu0 0
        %1041 = vmatpush1.bf16.msra.mxu0 0
        %1042 = vmatprep.subr.bf16.mxu0 0
        %1043 = vmatpush1.bf16.msra.mxu0 0
        %1044 = vmatprep.subr.bf16.mxu0 0
        %1045 = vmatpush1.bf16.msra.mxu0 0
        %1046 = vmatprep.subr.bf16.mxu0 0
        %1047 = vmatpush1.bf16.msra.mxu0 0
        %1048 = vmatprep.subr.bf16.mxu0 0
        %1049 = vmatpush1.bf16.msra.mxu0 0
        %1050 = vmatprep.subr.bf16.mxu0 0
        %1051 = vmatpush1.bf16.msra.mxu0 0
        %1052 = vmatprep.subr.bf16.mxu0 0
        %1053 = vmatpush1.bf16.msra.mxu0 0
        %1054 = vmatprep.subr.bf16.mxu0 0
        %1055 = vmatpush1.bf16.msra.mxu0 0
        %1056 = vmatprep.mubr.bf16.mxu0 0
        %1057 = vmatmul.mubr.bf16.gmra.mrb[0].mxu0 %v1018
        %v1058 = vpop.f32.mrb[0].mxu0
        %v1059 = vadd.f32 0.0, %v1058
        %v1060 = vpop.f32.mrb[0].mxu0
        %v1061 = vpop.f32.mrb[0].mxu0
        %v1062 = vpop.f32.mrb[0].mxu0
        %1063 = vdwg.mxu0
        %v1065 = vsel %vm792, %v1014, 0
        %v1068 = vsel %vm1020, %v789, 0
        %1070 = vmatprep.subr.bf16.mxu0 0
        %1071 = vmatpush1.bf16.msra.mxu0 %v1068
        %1072 = vmatprep.subr.bf16.mxu0 0
        %1073 = vmatpush1.bf16.msra.mxu0 0
        %1074 = vmatprep.subr.bf16.mxu0 0
        %1075 = vmatpush1.bf16.msra.mxu0 0
        %1076 = vmatprep.subr.bf16.mxu0 0
        %1077 = vmatpush1.bf16.msra.mxu0 0
        %1078 = vmatprep.subr.bf16.mxu0 0
        %1079 = vmatpush1.bf16.msra.mxu0 0
        %1080 = vmatprep.subr.bf16.mxu0 0
        %1081 = vmatpush1.bf16.msra.mxu0 0
        %1082 = vmatprep.subr.bf16.mxu0 0
        %1083 = vmatpush1.bf16.msra.mxu0 0
        %1084 = vmatprep.subr.bf16.mxu0 0
        %1085 = vmatpush1.bf16.msra.mxu0 0
        %1086 = vmatprep.subr.bf16.mxu0 0
        %1087 = vmatpush1.bf16.msra.mxu0 0
        %1088 = vmatprep.subr.bf16.mxu0 0
        %1089 = vmatpush1.bf16.msra.mxu0 0
        %1090 = vmatprep.subr.bf16.mxu0 0
        %1091 = vmatpush1.bf16.msra.mxu0 0
        %1092 = vmatprep.subr.bf16.mxu0 0
        %1093 = vmatpush1.bf16.msra.mxu0 0
        %1094 = vmatprep.subr.bf16.mxu0 0
        %1095 = vmatpush1.bf16.msra.mxu0 0
        %1096 = vmatprep.subr.bf16.mxu0 0
        %1097 = vmatpush1.bf16.msra.mxu0 0
        %1098 = vmatprep.subr.bf16.mxu0 0
        %1099 = vmatpush1.bf16.msra.mxu0 0
        %1100 = vmatprep.subr.bf16.mxu0 0
        %1101 = vmatpush1.bf16.msra.mxu0 0
        %1102 = vmatprep.mubr.bf16.mxu0 0
        %1103 = vmatmul.mubr.bf16.gmra.mrb[0].mxu0 %v1065
        %v1104 = vpop.f32.mrb[0].mxu0
        %v1105 = vadd.f32 0.0, %v1104
        %v1106 = vpop.f32.mrb[0].mxu0
        %v1107 = vpop.f32.mrb[0].mxu0
        %v1108 = vpop.f32.mrb[0].mxu0
        %1109 = vdwg.mxu0
        %v1111 = vsel %vm792, %v1015, 0
        %v1114 = vsel %vm1020, %v790, 0
        %1116 = vmatprep.subr.bf16.mxu0 0
        %1117 = vmatpush1.bf16.msra.mxu0 %v1114
        %1118 = vmatprep.subr.bf16.mxu0 0
        %1119 = vmatpush1.bf16.msra.mxu0 0
        %1120 = vmatprep.subr.bf16.mxu0 0
        %1121 = vmatpush1.bf16.msra.mxu0 0
        %1122 = vmatprep.subr.bf16.mxu0 0
        %1123 = vmatpush1.bf16.msra.mxu0 0
        %1124 = vmatprep.subr.bf16.mxu0 0
        %1125 = vmatpush1.bf16.msra.mxu0 0
        %1126 = vmatprep.subr.bf16.mxu0 0
        %1127 = vmatpush1.bf16.msra.mxu0 0
        %1128 = vmatprep.subr.bf16.mxu0 0
        %1129 = vmatpush1.bf16.msra.mxu0 0
        %1130 = vmatprep.subr.bf16.mxu0 0
        %1131 = vmatpush1.bf16.msra.mxu0 0
        %1132 = vmatprep.subr.bf16.mxu0 0
        %1133 = vmatpush1.bf16.msra.mxu0 0
        %1134 = vmatprep.subr.bf16.mxu0 0
        %1135 = vmatpush1.bf16.msra.mxu0 0
        %1136 = vmatprep.subr.bf16.mxu0 0
        %1137 = vmatpush1.bf16.msra.mxu0 0
        %1138 = vmatprep.subr.bf16.mxu0 0
        %1139 = vmatpush1.bf16.msra.mxu0 0
        %1140 = vmatprep.subr.bf16.mxu0 0
        %1141 = vmatpush1.bf16.msra.mxu0 0
        %1142 = vmatprep.subr.bf16.mxu0 0
        %1143 = vmatpush1.bf16.msra.mxu0 0
        %1144 = vmatprep.subr.bf16.mxu0 0
        %1145 = vmatpush1.bf16.msra.mxu0 0
        %1146 = vmatprep.subr.bf16.mxu0 0
        %1147 = vmatpush1.bf16.msra.mxu0 0
        %1148 = vmatprep.mubr.bf16.mxu0 0
        %1149 = vmatmul.mubr.bf16.gmra.mrb[0].mxu0 %v1111
        %v1150 = vpop.f32.mrb[0].mxu0
        %v1151 = vadd.f32 0.0, %v1150
        %v1152 = vpop.f32.mrb[0].mxu0
        %v1153 = vpop.f32.mrb[0].mxu0
        %v1154 = vpop.f32.mrb[0].mxu0
        %1155 = vdwg.mxu0
        %v1157 = vsel %vm792, %v1016, 0
        %v1160 = vsel %vm1020, %v791, 0
        %1162 = vmatprep.subr.bf16.mxu0 0
        %1163 = vmatpush1.bf16.msra.mxu0 %v1160
        %1164 = vmatprep.subr.bf16.mxu0 0
        %1165 = vmatpush1.bf16.msra.mxu0 0
        %1166 = vmatprep.subr.bf16.mxu0 0
        %1167 = vmatpush1.bf16.msra.mxu0 0
        %1168 = vmatprep.subr.bf16.mxu0 0
        %1169 = vmatpush1.bf16.msra.mxu0 0
        %1170 = vmatprep.subr.bf16.mxu0 0
        %1171 = vmatpush1.bf16.msra.mxu0 0
        %1172 = vmatprep.subr.bf16.mxu0 0
        %1173 = vmatpush1.bf16.msra.mxu0 0
        %1174 = vmatprep.subr.bf16.mxu0 0
        %1175 = vmatpush1.bf16.msra.mxu0 0
        %1176 = vmatprep.subr.bf16.mxu0 0
        %1177 = vmatpush1.bf16.msra.mxu0 0
        %1178 = vmatprep.subr.bf16.mxu0 0
        %1179 = vmatpush1.bf16.msra.mxu0 0
        %1180 = vmatprep.subr.bf16.mxu0 0
        %1181 = vmatpush1.bf16.msra.mxu0 0
        %1182 = vmatprep.subr.bf16.mxu0 0
        %1183 = vmatpush1.bf16.msra.mxu0 0
        %1184 = vmatprep.subr.bf16.mxu0 0
        %1185 = vmatpush1.bf16.msra.mxu0 0
        %1186 = vmatprep.subr.bf16.mxu0 0
        %1187 = vmatpush1.bf16.msra.mxu0 0
        %1188 = vmatprep.subr.bf16.mxu0 0
        %1189 = vmatpush1.bf16.msra.mxu0 0
        %1190 = vmatprep.subr.bf16.mxu0 0
        %1191 = vmatpush1.bf16.msra.mxu0 0
        %1192 = vmatprep.subr.bf16.mxu0 0
        %1193 = vmatpush1.bf16.msra.mxu0 0
        %1194 = vmatprep.mubr.bf16.mxu0 0
        %1195 = vmatmul.mubr.bf16.gmra.mrb[0].mxu0 %v1157
        %v1196 = vpop.f32.mrb[0].mxu0
        %v1197 = vadd.f32 0.0, %v1196
        %v1198 = vpop.f32.mrb[0].mxu0
        %v1199 = vpop.f32.mrb[0].mxu0
        %v1200 = vpop.f32.mrb[0].mxu0
        %1201 = vdwg.mxu0
        %v1202 = vrcp.pop %v1003
        %v1203 = vrcp.pop %v1006
        %v1204 = vrcp.pop %v1009
        %v1205 = vrcp.pop %v1012
        %v1206 = vmul.f32 %v1059, %v1202
        %v1207 = vmul.f32 %v1105, %v1203
        %v1208 = vmul.f32 %v1151, %v1204
        %v1209 = vmul.f32 %v1197, %v1205
        %v1210 = vpack.c.bf16 %v1206, %v1206
        %v1211 = vpack.c.bf16 %v1207, %v1207
        %v1212 = vpack.c.bf16 %v1208, %v1208
        %v1213 = vpack.c.bf16 %v1209, %v1209
        %v1214 = vld [vmem:[#allocation7] sm:$0xf]
        %v1215 = vld [vmem:[#allocation7 + $0x4] sm:$0xf]
        %v1216 = vld [vmem:[#allocation7 + $0x8] sm:$0xf]
        %v1217 = vld [vmem:[#allocation7 + $0xc] sm:$0xf]
        %v1219 = vsel %vm792, %v1210, 0
        %v1222 = vsel %vm1020, %v1214, 0
        %1224 = vmatprep.subr.bf16.mxu0 0
        %1225 = vmatpush1.bf16.msra.mxu0 %v1222
        %1226 = vmatprep.subr.bf16.mxu0 0
        %1227 = vmatpush1.bf16.msra.mxu0 0
        %1228 = vmatprep.subr.bf16.mxu0 0
        %1229 = vmatpush1.bf16.msra.mxu0 0
        %1230 = vmatprep.subr.bf16.mxu0 0
        %1231 = vmatpush1.bf16.msra.mxu0 0
        %1232 = vmatprep.subr.bf16.mxu0 0
        %1233 = vmatpush1.bf16.msra.mxu0 0
        %1234 = vmatprep.subr.bf16.mxu0 0
        %1235 = vmatpush1.bf16.msra.mxu0 0
        %1236 = vmatprep.subr.bf16.mxu0 0
        %1237 = vmatpush1.bf16.msra.mxu0 0
        %1238 = vmatprep.subr.bf16.mxu0 0
        %1239 = vmatpush1.bf16.msra.mxu0 0
        %1240 = vmatprep.subr.bf16.mxu0 0
        %1241 = vmatpush1.bf16.msra.mxu0 0
        %1242 = vmatprep.subr.bf16.mxu0 0
        %1243 = vmatpush1.bf16.msra.mxu0 0
        %1244 = vmatprep.subr.bf16.mxu0 0
        %1245 = vmatpush1.bf16.msra.mxu0 0
        %1246 = vmatprep.subr.bf16.mxu0 0
        %1247 = vmatpush1.bf16.msra.mxu0 0
        %1248 = vmatprep.subr.bf16.mxu0 0
        %1249 = vmatpush1.bf16.msra.mxu0 0
        %1250 = vmatprep.subr.bf16.mxu0 0
        %1251 = vmatpush1.bf16.msra.mxu0 0
        %1252 = vmatprep.subr.bf16.mxu0 0
        %1253 = vmatpush1.bf16.msra.mxu0 0
        %1254 = vmatprep.subr.bf16.mxu0 0
        %1255 = vmatpush1.bf16.msra.mxu0 0
        %1256 = vmatprep.mubr.bf16.mxu0 0
        %1257 = vmatmul.mubr.bf16.gmra.mrb[0].mxu0 %v1219
        %v1258 = vpop.f32.mrb[0].mxu0
        %v1259 = vadd.f32 0.0, %v1258
        %v1260 = vpop.f32.mrb[0].mxu0
        %v1261 = vpop.f32.mrb[0].mxu0
        %v1262 = vpop.f32.mrb[0].mxu0
        %1263 = vdwg.mxu0
        %v1265 = vsel %vm792, %v1211, 0
        %v1268 = vsel %vm1020, %v1215, 0
        %1270 = vmatprep.subr.bf16.mxu0 0
        %1271 = vmatpush1.bf16.msra.mxu0 %v1268
        %1272 = vmatprep.subr.bf16.mxu0 0
        %1273 = vmatpush1.bf16.msra.mxu0 0
        %1274 = vmatprep.subr.bf16.mxu0 0
        %1275 = vmatpush1.bf16.msra.mxu0 0
        %1276 = vmatprep.subr.bf16.mxu0 0
        %1277 = vmatpush1.bf16.msra.mxu0 0
        %1278 = vmatprep.subr.bf16.mxu0 0
        %1279 = vmatpush1.bf16.msra.mxu0 0
        %1280 = vmatprep.subr.bf16.mxu0 0
        %1281 = vmatpush1.bf16.msra.mxu0 0
        %1282 = vmatprep.subr.bf16.mxu0 0
        %1283 = vmatpush1.bf16.msra.mxu0 0
        %1284 = vmatprep.subr.bf16.mxu0 0
        %1285 = vmatpush1.bf16.msra.mxu0 0
        %1286 = vmatprep.subr.bf16.mxu0 0
        %1287 = vmatpush1.bf16.msra.mxu0 0
        %1288 = vmatprep.subr.bf16.mxu0 0
        %1289 = vmatpush1.bf16.msra.mxu0 0
        %1290 = vmatprep.subr.bf16.mxu0 0
        %1291 = vmatpush1.bf16.msra.mxu0 0
        %1292 = vmatprep.subr.bf16.mxu0 0
        %1293 = vmatpush1.bf16.msra.mxu0 0
        %1294 = vmatprep.subr.bf16.mxu0 0
        %1295 = vmatpush1.bf16.msra.mxu0 0
        %1296 = vmatprep.subr.bf16.mxu0 0
        %1297 = vmatpush1.bf16.msra.mxu0 0
        %1298 = vmatprep.subr.bf16.mxu0 0
        %1299 = vmatpush1.bf16.msra.mxu0 0
        %1300 = vmatprep.subr.bf16.mxu0 0
        %1301 = vmatpush1.bf16.msra.mxu0 0
        %1302 = vmatprep.mubr.bf16.mxu0 0
        %1303 = vmatmul.mubr.bf16.gmra.mrb[0].mxu0 %v1265
        %v1304 = vpop.f32.mrb[0].mxu0
        %v1305 = vadd.f32 0.0, %v1304
        %v1306 = vpop.f32.mrb[0].mxu0
        %v1307 = vpop.f32.mrb[0].mxu0
        %v1308 = vpop.f32.mrb[0].mxu0
        %1309 = vdwg.mxu0
        %v1311 = vsel %vm792, %v1212, 0
        %v1314 = vsel %vm1020, %v1216, 0
        %1316 = vmatprep.subr.bf16.mxu0 0
        %1317 = vmatpush1.bf16.msra.mxu0 %v1314
        %1318 = vmatprep.subr.bf16.mxu0 0
        %1319 = vmatpush1.bf16.msra.mxu0 0
        %1320 = vmatprep.subr.bf16.mxu0 0
        %1321 = vmatpush1.bf16.msra.mxu0 0
        %1322 = vmatprep.subr.bf16.mxu0 0
        %1323 = vmatpush1.bf16.msra.mxu0 0
        %1324 = vmatprep.subr.bf16.mxu0 0
        %1325 = vmatpush1.bf16.msra.mxu0 0
        %1326 = vmatprep.subr.bf16.mxu0 0
        %1327 = vmatpush1.bf16.msra.mxu0 0
        %1328 = vmatprep.subr.bf16.mxu0 0
        %1329 = vmatpush1.bf16.msra.mxu0 0
        %1330 = vmatprep.subr.bf16.mxu0 0
        %1331 = vmatpush1.bf16.msra.mxu0 0
        %1332 = vmatprep.subr.bf16.mxu0 0
        %1333 = vmatpush1.bf16.msra.mxu0 0
        %1334 = vmatprep.subr.bf16.mxu0 0
        %1335 = vmatpush1.bf16.msra.mxu0 0
        %1336 = vmatprep.subr.bf16.mxu0 0
        %1337 = vmatpush1.bf16.msra.mxu0 0
        %1338 = vmatprep.subr.bf16.mxu0 0
        %1339 = vmatpush1.bf16.msra.mxu0 0
        %1340 = vmatprep.subr.bf16.mxu0 0
        %1341 = vmatpush1.bf16.msra.mxu0 0
        %1342 = vmatprep.subr.bf16.mxu0 0
        %1343 = vmatpush1.bf16.msra.mxu0 0
        %1344 = vmatprep.subr.bf16.mxu0 0
        %1345 = vmatpush1.bf16.msra.mxu0 0
        %1346 = vmatprep.subr.bf16.mxu0 0
        %1347 = vmatpush1.bf16.msra.mxu0 0
        %1348 = vmatprep.mubr.bf16.mxu0 0
        %1349 = vmatmul.mubr.bf16.gmra.mrb[0].mxu0 %v1311
        %v1350 = vpop.f32.mrb[0].mxu0
        %v1351 = vadd.f32 0.0, %v1350
        %v1352 = vpop.f32.mrb[0].mxu0
        %v1353 = vpop.f32.mrb[0].mxu0
        %v1354 = vpop.f32.mrb[0].mxu0
        %1355 = vdwg.mxu0
        %v1357 = vsel %vm792, %v1213, 0
        %v1360 = vsel %vm1020, %v1217, 0
        %1362 = vmatprep.subr.bf16.mxu0 0
        %1363 = vmatpush1.bf16.msra.mxu0 %v1360
        %1364 = vmatprep.subr.bf16.mxu0 0
        %1365 = vmatpush1.bf16.msra.mxu0 0
        %1366 = vmatprep.subr.bf16.mxu0 0
        %1367 = vmatpush1.bf16.msra.mxu0 0
        %1368 = vmatprep.subr.bf16.mxu0 0
        %1369 = vmatpush1.bf16.msra.mxu0 0
        %1370 = vmatprep.subr.bf16.mxu0 0
        %1371 = vmatpush1.bf16.msra.mxu0 0
        %1372 = vmatprep.subr.bf16.mxu0 0
        %1373 = vmatpush1.bf16.msra.mxu0 0
        %1374 = vmatprep.subr.bf16.mxu0 0
        %1375 = vmatpush1.bf16.msra.mxu0 0
        %1376 = vmatprep.subr.bf16.mxu0 0
        %1377 = vmatpush1.bf16.msra.mxu0 0
        %1378 = vmatprep.subr.bf16.mxu0 0
        %1379 = vmatpush1.bf16.msra.mxu0 0
        %1380 = vmatprep.subr.bf16.mxu0 0
        %1381 = vmatpush1.bf16.msra.mxu0 0
        %1382 = vmatprep.subr.bf16.mxu0 0
        %1383 = vmatpush1.bf16.msra.mxu0 0
        %1384 = vmatprep.subr.bf16.mxu0 0
        %1385 = vmatpush1.bf16.msra.mxu0 0
        %1386 = vmatprep.subr.bf16.mxu0 0
        %1387 = vmatpush1.bf16.msra.mxu0 0
        %1388 = vmatprep.subr.bf16.mxu0 0
        %1389 = vmatpush1.bf16.msra.mxu0 0
        %1390 = vmatprep.subr.bf16.mxu0 0
        %1391 = vmatpush1.bf16.msra.mxu0 0
        %1392 = vmatprep.subr.bf16.mxu0 0
        %1393 = vmatpush1.bf16.msra.mxu0 0
        %1394 = vmatprep.mubr.bf16.mxu0 0
        %1395 = vmatmul.mubr.bf16.gmra.mrb[0].mxu0 %v1357
        %v1396 = vpop.f32.mrb[0].mxu0
        %v1397 = vadd.f32 0.0, %v1396
        %v1398 = vpop.f32.mrb[0].mxu0
        %v1399 = vpop.f32.mrb[0].mxu0
        %v1400 = vpop.f32.mrb[0].mxu0
        %1401 = vdwg.mxu0
        %v1402 = vsel %vm294, %v1259, 0.0
        %v1403 = vsel %vm294, %v1305, 0.0
        %v1404 = vadd.f32 %v1402, %v1403
        %v1405 = vsel %vm294, %v1351, 0.0
        %v1406 = vadd.f32 %v1404, %v1405
        %v1407 = vsel %vm294, %v1397, 0.0
        %v1408 = vadd.f32 %v1406, %v1407
        %v1409 = vld [vmem:[%s4] sm:$0x1]
        %v1411 = vlaneseq
        %v1412 = vshrl.u32 %v1411, 7
        %v1413 = vsub.s32 0, %v1412
        %v1414 = vrot.slane %v1409, %v1413
        %v1416 = vadd.f32 %v1408, %v1414
        %1417 = vst.msk [vmem:[%s268] sm:$0xff] %vm294, %v1416
        %s1418 = sand.u32 %s141, 1
        %s1419 = scalar_lea.sflag [#allocation4], %s1418
        %s1420 = sand.u32 %s141, 1
        %s1421 = smul.addr %s1420, 8
        %s1422 = scalar_lea.vmem [#allocation8], %s1421
        // Predicated region
        $region53: #{tpu_custom_call.1} parent=39 // pred_check
          %p1423 = pneg %p151
        $region54: #{tpu_custom_call.1} parent=39 // pred_check_branch
          %1425 = sbr.rel (%p1423) target = $region56
        $region55: #{tpu_custom_call.1} parent=39 // pred_region
          %s1427 = ssub.s32 128, 128
          %1428 = vsyncadd %s1419, %s1427
          %s1429 = smul.addr %s23, 128
          %s1430 = scalar_lea.hbm %s5, %s1429
          %s1432 = sshll.u32 %s1422, 4
          %s1433 = int_to_ptr.vmem [resolvable:$true] %s1432
          %1435 = dma.vmem_to_hbm [thread:$0]  %s1433, 128, %s1430, %s1419
        $region56: #{tpu_custom_call.1} parent=39 // pred_fallthru
          _
      $region40: #{tpu_custom_call.1} parent=5 // pred_fallthru
        _
      %p1436 = scmp.le.s32.totalorder 2, %s18
      // Predicated region
      $region57: #{tpu_custom_call.1} parent=5 // pred_check
        %p1437 = pneg %p1436
      $region58: #{tpu_custom_call.1} parent=5 // pred_check_branch
        %1439 = sbr.rel (%p1437) target = $region60
      $region59: #{tpu_custom_call.1} parent=5 // pred_region
        %s1440 = ssub.s32 %s18, 2
        // Predicated region
        $region61: #{tpu_custom_call.1} parent=59 // pred_check
          %p1441 = pneg %p157
        $region62: #{tpu_custom_call.1} parent=59 // pred_check_branch
          %1443 = sbr.rel (%p1441) target = $region64
        $region63: #{tpu_custom_call.1} parent=59 // pred_region
          %s1444 = sand.u32 %s142, 1
          %s1445 = scalar_lea.sflag [#allocation4], %s1444
          %s1446 = sand.u32 %s142, 1
          %s1447 = smul.addr %s1446, 8
          %s1448 = scalar_lea.vmem [#allocation8], %s1447
          %1449 = dma.done %s1445, 128
        $region64: #{tpu_custom_call.1} parent=59 // pred_fallthru
          _
      $region60: #{tpu_custom_call.1} parent=5 // pred_fallthru
        _
    $region6: #{tpu_custom_call.1} parent=1 // loop_footer
      %s22 = sadd.s32 1, %s18
    $region7: #{tpu_custom_call.1} parent=1 // loop_footer_branch
      %17 = sbr.rel target = $region3
    $region8: #{tpu_custom_call.1} parent=1 // loop_exit
      _
    %1450 = vsyncpa [#allocation3], 1
    %s1451 = scalar_lea.sflag [#allocation3], 1
    %1452 = vsyncpa %s1451, 1
    %1453 = vsyncpa [#allocation6], 1
    %1454 = vsyncpa [#allocation4], 1
    %s1455 = scalar_lea.sflag [#allocation4], 1
    %1456 = vsyncpa %s1455, 1

// kernel: tpu_custom_call.1
$region0: #{tpu_custom_call.1}
  #allocation0 [shape = 'u32[]', space=smem, size = 0x4, offset = 0x4, fixed_abs, tag = 'smem constant byte address 0x4 - core index']
  #allocation1 [shape = 'u32[144,128]{1,0:T(1,128)}', space=vmem, size = 0x12000, scoped, tag = 'internal scratch']
  %s0 = inlined_call_operand.hbm [shape: bf16[2,8,32], index: 0, kind: input, shape index: {}]
  %s1 = inlined_call_operand.hbm [shape: bf16[32,96], index: 1, kind: input, shape index: {}]
  %s2 = inlined_call_operand.vmem [shape: f32[1,96], index: 2, kind: input, shape index: {}]
  %s3 = inlined_call_operand.hbm [shape: bf16[4,8,32], index: 3, kind: input, shape index: {}]
  %s4 = inlined_call_operand.vmem [shape: f32[1,32], index: 4, kind: input, shape index: {}]
  %s5 = inlined_call_operand.hbm [shape: f32[2,8,32], index: 5, kind: output, shape index: {}]
  %s6 = sld [smem:[#allocation0]]
  $region65: #{tpu_custom_call.1} parent=0
    _
  %s8 = ssub.s32 1, %s6
  %s9 = scalar_select 0, %s8, %s6
  $region1: #{tpu_custom_call.1} parent=0
    #allocation2 [shape = 'u8[4096]{0}', space=vmem, size = 0x1000, scoped, tag = 'input window, operand 0']
    #allocation3 [shape = 's32[2]{0}', space=sflag, size = 0x8, scoped, tag = 'scoped memory for tpu_custom_call.1']
    #allocation4 [shape = 's32[2]{0}', space=sflag, size = 0x8, scoped, tag = 'scoped memory for tpu_custom_call.1']
    #allocation5 [shape = 'u8[8192]{0}', space=vmem, size = 0x2000, scoped, tag = 'input window, operand 1, single buffered']
    #allocation6 [shape = 's32[1]{0}', space=sflag, size = 0x4, scoped, tag = 'scoped memory for tpu_custom_call.1']
    #allocation7 [shape = 'u8[8192]{0}', space=vmem, size = 0x2000, scoped, tag = 'input window, operand 3, single buffered']
    #allocation8 [shape = 'u8[8192]{0}', space=vmem, size = 0x2000, scoped, tag = 'output window, operand 0']
    %10 = vsyncpa [#allocation3], 0
    %s11 = scalar_lea.sflag [#allocation3], 1
    %12 = vsyncpa %s11, 0
    %13 = vsyncpa [#allocation6], 0
    %14 = vsyncpa [#allocation4], 0
    %s15 = scalar_lea.sflag [#allocation4], 1
    %16 = vsyncpa %s15, 0
    loop: start=0, step=1, limit=4
    $region2: #{tpu_custom_call.1} parent=1 // loop_pre_header
      _
    $region3: #{tpu_custom_call.1} parent=1 // loop_header
      %s18 = sphi 0, %s22
      %p19 = scmp.ge.s32.totalorder %s18, 4
      %s28 = sphi 0, %s30
      %s31 = sphi 0, %s28
      %s32 = sphi 0, %s31
      %s48 = sphi 0, %s32
      %s52 = sphi 0, %s52
      %s54 = sphi 0, %s52
      %s55 = sphi 0, %s54
      %s69 = sphi 0, %s55
      %s73 = sphi 0, %s73
      %s75 = sphi 0, %s73
      %s76 = sphi 0, %s75
      %s90 = sphi 0, %s76
      %s94 = sphi 0, %s94
      %s96 = sphi 0, %s94
      %s97 = sphi 0, %s96
      %s111 = sphi 0, %s97
      %s115 = sphi 0, %s115
      %s117 = sphi 0, %s115
      %s118 = sphi 0, %s117
      %s132 = sphi 0, %s118
      %s138 = sphi 0, %s140
      %s141 = sphi 0, %s138
      %s142 = sphi 0, %s141
      %s158 = sphi 0, %s142
    $region4: #{tpu_custom_call.1} parent=1 // loop_header_branch
      %21 = sbr.rel (%p19) target = $region8
    $region5: #{tpu_custom_call.1} parent=1 // loop_body
      %s23 = ssub.s32 %s18, 1
      %s24 = ssub.s32 %s18, 2
      %s25 = sadd.s32 %s18, 1
      %s26 = ssub.s32 %s18, %s25
      %p27 = scmp.eq.s32.totalorder %s26, 0
      %s29 = sadd.s32 %s28, 1
      %s30 = scalar_select %p27, %s28, %s29
      %p33 = pneg %p27
      %p34 = scmp.eq.s32.totalorder %s18, 1
      %p35 = por %p33, %p34
      %p36 = scmp.ne.s32.totalorder %s28, %s31
      %p37 = scmp.eq.s32.totalorder %s18, 0
      %p38 = por %p36, %p37
      %p39 = scmp.ne.s32.totalorder %s28, %s31
      %p40 = scmp.eq.s32.totalorder %s23, 1
      %p41 = por %p39, %p40
      %p42 = scmp.ne.s32.totalorder %s31, %s32
      %p43 = scmp.eq.s32.totalorder %s23, 0
      %p44 = por %p42, %p43
      %p45 = scmp.ne.s32.totalorder %s31, %s32
      %p46 = scmp.eq.s32.totalorder %s24, 1
      %p47 = por %p45, %p46
      %p49 = scmp.ne.s32.totalorder %s32, %s48
      %p50 = scmp.eq.s32.totalorder %s24, 0
      %p51 = por %p49, %p50
      %s53 = sadd.s32 %s52, 1
      %p56 = scmp.eq.s32.totalorder %s18, 1
      %p57 = scmp.ne.s32.totalorder %s52, %s54
      %p58 = scmp.eq.s32.totalorder %s18, 0
      %p59 = por %p57, %p58
      %p60 = scmp.ne.s32.totalorder %s52, %s54
      %p61 = scmp.eq.s32.totalorder %s23, 1
      %p62 = por %p60, %p61
      %p63 = scmp.ne.s32.totalorder %s54, %s55
      %p64 = scmp.eq.s32.totalorder %s23, 0
      %p65 = por %p63, %p64
      %p66 = scmp.ne.s32.totalorder %s54, %s55
      %p67 = scmp.eq.s32.totalorder %s24, 1
      %p68 = por %p66, %p67
      %p70 = scmp.ne.s32.totalorder %s55, %s69
      %p71 = scmp.eq.s32.totalorder %s24, 0
      %p72 = por %p70, %p71
      %s74 = sadd.s32 %s73, 1
      %p77 = scmp.eq.s32.totalorder %s18, 1
      %p78 = scmp.ne.s32.totalorder %s73, %s75
      %p79 = scmp.eq.s32.totalorder %s18, 0
      %p80 = por %p78, %p79
      %p81 = scmp.ne.s32.totalorder %s73, %s75
      %p82 = scmp.eq.s32.totalorder %s23, 1
      %p83 = por %p81, %p82
      %p84 = scmp.ne.s32.totalorder %s75, %s76
      %p85 = scmp.eq.s32.totalorder %s23, 0
      %p86 = por %p84, %p85
      %p87 = scmp.ne.s32.totalorder %s75, %s76
      %p88 = scmp.eq.s32.totalorder %s24, 1
      %p89 = por %p87, %p88
      %p91 = scmp.ne.s32.totalorder %s76, %s90
      %p92 = scmp.eq.s32.totalorder %s24, 0
      %p93 = por %p91, %p92
      %s95 = sadd.s32 %s94, 1
      %p98 = scmp.eq.s32.totalorder %s18, 1
      %p99 = scmp.ne.s32.totalorder %s94, %s96
      %p100 = scmp.eq.s32.totalorder %s18, 0
      %p101 = por %p99, %p100
      %p102 = scmp.ne.s32.totalorder %s94, %s96
      %p103 = scmp.eq.s32.totalorder %s23, 1
      %p104 = por %p102, %p103
      %p105 = scmp.ne.s32.totalorder %s96, %s97
      %p106 = scmp.eq.s32.totalorder %s23, 0
      %p107 = por %p105, %p106
      %p108 = scmp.ne.s32.totalorder %s96, %s97
      %p109 = scmp.eq.s32.totalorder %s24, 1
      %p110 = por %p108, %p109
      %p112 = scmp.ne.s32.totalorder %s97, %s111
      %p113 = scmp.eq.s32.totalorder %s24, 0
      %p114 = por %p112, %p113
      %s116 = sadd.s32 %s115, 1
      %p119 = scmp.eq.s32.totalorder %s18, 1
      %p120 = scmp.ne.s32.totalorder %s115, %s117
      %p121 = scmp.eq.s32.totalorder %s18, 0
      %p122 = por %p120, %p121
      %p123 = scmp.ne.s32.totalorder %s115, %s117
      %p124 = scmp.eq.s32.totalorder %s23, 1
      %p125 = por %p123, %p124
      %p126 = scmp.ne.s32.totalorder %s117, %s118
      %p127 = scmp.eq.s32.totalorder %s23, 0
      %p128 = por %p126, %p127
      %p129 = scmp.ne.s32.totalorder %s117, %s118
      %p130 = scmp.eq.s32.totalorder %s24, 1
      %p131 = por %p129, %p130
      %p133 = scmp.ne.s32.totalorder %s118, %s132
      %p134 = scmp.eq.s32.totalorder %s24, 0
      %p135 = por %p133, %p134
      %s136 = ssub.s32 %s18, %s25
      %p137 = scmp.eq.s32.totalorder %s136, 0
      %s139 = sadd.s32 %s138, 1
      %s140 = scalar_select %p137, %s138, %s139
      %p143 = pneg %p137
      %p144 = scmp.eq.s32.totalorder %s18, 1
      %p145 = por %p143, %p144
      %p146 = scmp.ne.s32.totalorder %s138, %s141
      %p147 = scmp.eq.s32.totalorder %s18, 0
      %p148 = por %p146, %p147
      %p149 = scmp.ne.s32.totalorder %s138, %s141
      %p150 = scmp.eq.s32.totalorder %s23, 1
      %p151 = por %p149, %p150
      %p152 = scmp.ne.s32.totalorder %s141, %s142
      %p153 = scmp.eq.s32.totalorder %s23, 0
      %p154 = por %p152, %p153
      %p155 = scmp.ne.s32.totalorder %s141, %s142
      %p156 = scmp.eq.s32.totalorder %s24, 1
      %p157 = por %p155, %p156
      %p159 = scmp.ne.s32.totalorder %s142, %s158
      %p160 = scmp.eq.s32.totalorder %s24, 0
      %p161 = por %p159, %p160
      %p162 = scmp.le.s32.totalorder 1, %s18
      %p163 = scmp.lt.s32.totalorder %s18, 3
      %p164 = pnand %p162, %p163
      %p165 = pneg %p164
      // Predicated region
      $region9: #{tpu_custom_call.1} parent=5 // pred_check
        _
      $region10: #{tpu_custom_call.1} parent=5 // pred_check_branch
        %167 = sbr.rel (%p164) target = $region12
      $region11: #{tpu_custom_call.1} parent=5 // pred_region
        %s168 = ssub.s32 %s18, 1
        // Predicated region
        $region13: #{tpu_custom_call.1} parent=11 // pred_check
          %p169 = pneg %p65
        $region14: #{tpu_custom_call.1} parent=11 // pred_check_branch
          %171 = sbr.rel (%p169) target = $region16
        $region15: #{tpu_custom_call.1} parent=11 // pred_region
          %s173 = ssub.s32 256, 256
          %174 = vsyncadd [#allocation6], %s173
          %s175 = sshll.u32 [#allocation5], 4
          %s176 = int_to_ptr.vmem [resolvable:$true] %s175
          %181 = dma.hbm_to_vmem [thread:$0]  %s1, 256, %s176, [#allocation6], 64, 64, 4
        $region16: #{tpu_custom_call.1} parent=11 // pred_fallthru
          _
        // Predicated region
        $region17: #{tpu_custom_call.1} parent=11 // pred_check
          %p182 = pneg %p86
        $region18: #{tpu_custom_call.1} parent=11 // pred_check_branch
          %184 = sbr.rel (%p182) target = $region20
        $region19: #{tpu_custom_call.1} parent=11 // pred_region
          _
        $region20: #{tpu_custom_call.1} parent=11 // pred_fallthru
          _
        // Predicated region
        $region21: #{tpu_custom_call.1} parent=11 // pred_check
          %p185 = pneg %p107
        $region22: #{tpu_custom_call.1} parent=11 // pred_check_branch
          %187 = sbr.rel (%p185) target = $region24
        $region23: #{tpu_custom_call.1} parent=11 // pred_region
          %s189 = ssub.s32 256, 256
          %190 = vsyncadd [#allocation6], %s189
          %s191 = sshll.u32 [#allocation7], 4
          %s192 = int_to_ptr.vmem [resolvable:$true] %s191
          %197 = dma.hbm_to_vmem [thread:$0]  %s3, 256, %s192, [#allocation6], 64, 64, 4
        $region24: #{tpu_custom_call.1} parent=11 // pred_fallthru
          _
        // Predicated region
        $region25: #{tpu_custom_call.1} parent=11 // pred_check
          %p198 = pneg %p128
        $region26: #{tpu_custom_call.1} parent=11 // pred_check_branch
          %200 = sbr.rel (%p198) target = $region28
        $region27: #{tpu_custom_call.1} parent=11 // pred_region
          _
        $region28: #{tpu_custom_call.1} parent=11 // pred_fallthru
          _
      $region12: #{tpu_custom_call.1} parent=5 // pred_fallthru
        _
      %p201 = scmp.lt.s32.totalorder %s18, 2
      // Predicated region
      $region29: #{tpu_custom_call.1} parent=5 // pred_check
        %p202 = pneg %p201
      $region30: #{tpu_custom_call.1} parent=5 // pred_check_branch
        %204 = sbr.rel (%p202) target = $region32
      $region31: #{tpu_custom_call.1} parent=5 // pred_region
        // Predicated region
        $region33: #{tpu_custom_call.1} parent=31 // pred_check
          %p205 = pneg %p38
        $region34: #{tpu_custom_call.1} parent=31 // pred_check_branch
          %207 = sbr.rel (%p205) target = $region36
        $region35: #{tpu_custom_call.1} parent=31 // pred_region
          %s208 = sand.u32 %s28, 1
          %s209 = scalar_lea.sflag [#allocation3], %s208
          %s210 = sand.u32 %s28, 1
          %s211 = smul.addr %s210, 4
          %s212 = scalar_lea.vmem [#allocation2], %s211
          %s214 = ssub.s32 64, 64
          %215 = vsyncadd %s209, %s214
          %s216 = smul.addr %s18, 64
          %s217 = scalar_lea.hbm %s0, %s216
          %s219 = sshll.u32 %s212, 4
          %s220 = int_to_ptr.vmem [resolvable:$true] %s219
          %222 = dma.hbm_to_vmem [thread:$0]  %s217, 64, %s220, %s209
        $region36: #{tpu_custom_call.1} parent=31 // pred_fallthru
          _
      $region32: #{tpu_custom_call.1} parent=5 // pred_fallthru
        _
      %p223 = scmp.le.s32.totalorder 1, %s18
      %p224 = scmp.lt.s32.totalorder %s18, 3
      %p225 = pnand %p223, %p224
      %p226 = pneg %p225
      // Predicated region
      $region37: #{tpu_custom_call.1} parent=5 // pred_check
        _
      $region38: #{tpu_custom_call.1} parent=5 // pred_check_branch
        %228 = sbr.rel (%p225) target = $region40
      $region39: #{tpu_custom_call.1} parent=5 // pred_region
        %s229 = ssub.s32 %s18, 1
        %s230 = sand.u32 %s31, 1
        %s231 = scalar_lea.sflag [#allocation3], %s230
        %s232 = sand.u32 %s31, 1
        %s233 = smul.addr %s232, 4
        %s234 = scalar_lea.vmem [#allocation2], %s233
        // Predicated region
        $region41: #{tpu_custom_call.1} parent=39 // pred_check
          %p235 = pneg %p44
        $region42: #{tpu_custom_call.1} parent=39 // pred_check_branch
          %237 = sbr.rel (%p235) target = $region44
        $region43: #{tpu_custom_call.1} parent=39 // pred_region
          %238 = dma.done %s231, 64
        $region44: #{tpu_custom_call.1} parent=39 // pred_fallthru
          _
        // Predicated region
        $region45: #{tpu_custom_call.1} parent=39 // pred_check
          %p239 = pneg %p65
        $region46: #{tpu_custom_call.1} parent=39 // pred_check_branch
          %241 = sbr.rel (%p239) target = $region48
        $region47: #{tpu_custom_call.1} parent=39 // pred_region
          %242 = dma.done [#allocation6], 256
        $region48: #{tpu_custom_call.1} parent=39 // pred_fallthru
          _
        // Predicated region
        $region49: #{tpu_custom_call.1} parent=39 // pred_check
          %p243 = pneg %p107
        $region50: #{tpu_custom_call.1} parent=39 // pred_check_branch
          %245 = sbr.rel (%p243) target = $region52
        $region51: #{tpu_custom_call.1} parent=39 // pred_region
          %246 = dma.done [#allocation6], 256
        $region52: #{tpu_custom_call.1} parent=39 // pred_fallthru
          _
        %s247 = sand.u32 %s31, 1
        %s248 = scalar_lea.sflag [#allocation3], %s247
        %s249 = sand.u32 %s31, 1
        %s250 = smul.addr %s249, 4
        %s251 = scalar_lea.vmem [#allocation2], %s250
        %p252 = pneg %p44
        %p253 = pneg %p41
        %p254 = pneg %p65
        %p255 = pneg %p62
        %p256 = pneg %p86
        %p257 = pneg %p83
        %p258 = pneg %p107
        %p259 = pneg %p104
        %p260 = pneg %p128
        %p261 = pneg %p125
        %p262 = pneg %p154
        %p263 = pneg %p151
        %s264 = sand.u32 %s141, 1
        %s265 = scalar_lea.sflag [#allocation4], %s264
        %s266 = sand.u32 %s141, 1
        %s267 = smul.addr %s266, 8
        %s268 = scalar_lea.vmem [#allocation8], %s267
        %v270 = vld [vmem:[%s234] sm:$0xf]
        %v271 = vld [vmem:[#allocation5] sm:$0xf]
        %v272 = vld [vmem:[#allocation5 + $0x4] sm:$0xf]
        %v273 = vld [vmem:[#allocation5 + $0x8] sm:$0xf]
        %v274 = vld [vmem:[#allocation5 + $0xc] sm:$0xf]
        %v275 = vld [vmem:[%s2] sm:$0x1]
        %v277 = vlaneseq
        %v278 = vshrl.u32 %v277, 7
        %v279 = vsub.s32 0, %v278
        %v280 = vrot.slane %v275, %v279
        %v286 = vunpack.c.l.b16 %v271
        %v287 = vunpack.c.l.b16 %v272
        %v288 = vunpack.c.l.b16 %v273
        %v289 = vunpack.c.l.b16 %v274
        %v290 = vpack.c.b16 %v287, %v286
        %v291 = vpack.c.b16 %v289, %v288
        %vm294 = vcmask 261120
        %v296 = vsel %vm294, %v270, 0
        %298 = vmatprep.subr.bf16.mxu0 0
        %299 = vmatpush1.bf16.msra.mxu0 %v290
        %300 = vmatprep.subr.bf16.mxu0 0
        %301 = vmatpush1.bf16.msra.mxu0 %v291
        %302 = vmatprep.subr.bf16.mxu0 0
        %303 = vmatpush1.bf16.msra.mxu0 0
        %304 = vmatprep.subr.bf16.mxu0 0
        %305 = vmatpush1.bf16.msra.mxu0 0
        %306 = vmatprep.subr.bf16.mxu0 0
        %307 = vmatpush1.bf16.msra.mxu0 0
        %308 = vmatprep.subr.bf16.mxu0 0
        %309 = vmatpush1.bf16.msra.mxu0 0
        %310 = vmatprep.subr.bf16.mxu0 0
        %311 = vmatpush1.bf16.msra.mxu0 0
        %312 = vmatprep.subr.bf16.mxu0 0
        %313 = vmatpush1.bf16.msra.mxu0 0
        %314 = vmatprep.subr.bf16.mxu0 0
        %315 = vmatpush1.bf16.msra.mxu0 0
        %316 = vmatprep.subr.bf16.mxu0 0
        %317 = vmatpush1.bf16.msra.mxu0 0
        %318 = vmatprep.subr.bf16.mxu0 0
        %319 = vmatpush1.bf16.msra.mxu0 0
        %320 = vmatprep.subr.bf16.mxu0 0
        %321 = vmatpush1.bf16.msra.mxu0 0
        %322 = vmatprep.subr.bf16.mxu0 0
        %323 = vmatpush1.bf16.msra.mxu0 0
        %324 = vmatprep.subr.bf16.mxu0 0
        %325 = vmatpush1.bf16.msra.mxu0 0
        %326 = vmatprep.subr.bf16.mxu0 0
        %327 = vmatpush1.bf16.msra.mxu0 0
        %328 = vmatprep.subr.bf16.mxu0 0
        %329 = vmatpush1.bf16.msra.mxu0 0
        %330 = vmatprep.mubr.bf16.mxu0 0
        %331 = vmatmul.mubr.bf16.gmra.mrb[0].mxu0 %v296
        %v332 = vpop.f32.mrb[0].mxu0
        %v333 = vadd.f32 %v280, %v332
        %v334 = vpop.f32.mrb[0].mxu0
        %v335 = vpop.f32.mrb[0].mxu0
        %v336 = vpop.f32.mrb[0].mxu0
        %337 = vdwg.mxu0
        %339 = vrot.lane.b32.xlu0 %v333, 120
        %v340 = vpop.permute.xlu0 %339
        %342 = vrot.lane.b32.xlu0 %v333, 112
        %v343 = vpop.permute.xlu0 %342
        %345 = vrot.lane.b32.xlu0 %v333, 104
        %v346 = vpop.permute.xlu0 %345
        %v348 = vcombine.low %v333, %v343
        %v349 = vcombine.high %v333, %v343
        %v351 = vunpack.c.l.s4 1983009808
        %v352 = vunpack.c.0.s8 %v351
        %v353 = vlaneseq
        %v354 = vshrl.u32 %v353, 7
        %v355 = vsub.s32 %v352, %v354
        %v356 = vrot.slane %v348, %v355
        %v358 = vunpack.c.l.s4 1983009808
        %v359 = vunpack.c.0.s8 %v358
        %v360 = vlaneseq
        %v361 = vshrl.u32 %v360, 7
        %v362 = vsub.s32 %v359, %v361
        %v363 = vrot.slane %v349, %v362
        %v364 = vcombine.low %v340, %v346
        %v365 = vcombine.high %v340, %v346
        %v367 = vunpack.c.l.s4 1983009808
        %v368 = vunpack.c.0.s8 %v367
        %v369 = vlaneseq
        %v370 = vshrl.u32 %v369, 7
        %v371 = vsub.s32 %v368, %v370
        %v372 = vrot.slane %v364, %v371
        %v374 = vunpack.c.l.s4 1983009808
        %v375 = vunpack.c.0.s8 %v374
        %v376 = vlaneseq
        %v377 = vshrl.u32 %v376, 7
        %v378 = vsub.s32 %v375, %v377
        %v379 = vrot.slane %v365, %v378
        %v380 = vcombine.low %v356, %v372
        %v381 = vcombine.high %v356, %v372
        %v383 = vunpack.c.l.s4 1934713408
        %v384 = vunpack.c.0.s8 %v383
        %v385 = vlaneseq
        %v386 = vshrl.u32 %v385, 7
        %v387 = vsub.s32 %v384, %v386
        %v388 = vrot.slane %v380, %v387
        %v390 = vunpack.c.l.s4 1934713408
        %v391 = vunpack.c.0.s8 %v390
        %v392 = vlaneseq
        %v393 = vshrl.u32 %v392, 7
        %v394 = vsub.s32 %v391, %v393
        %v395 = vrot.slane %v381, %v394
        %v396 = vcombine.low %v363, %v379
        %v397 = vcombine.high %v363, %v379
        %v399 = vunpack.c.l.s4 1934713408
        %v400 = vunpack.c.0.s8 %v399
        %v401 = vlaneseq
        %v402 = vshrl.u32 %v401, 7
        %v403 = vsub.s32 %v400, %v402
        %v404 = vrot.slane %v396, %v403
        %v406 = vunpack.c.l.s4 1934713408
        %v407 = vunpack.c.0.s8 %v406
        %v408 = vlaneseq
        %v409 = vshrl.u32 %v408, 7
        %v410 = vsub.s32 %v407, %v409
        %v411 = vrot.slane %v397, %v410
        %v412 = vcombine.high %v388, 0.0
        %v413 = vcombine.high %v395, 0.0
        %v414 = vcombine.high %v404, 0.0
        %v415 = vcombine.high %v411, 0.0
        %v416 = vcombine.low %v388, %v395
        %v418 = vunpack.c.l.s4 1983009808
        %v419 = vunpack.c.0.s8 %v418
        %v420 = vlaneseq
        %v421 = vshrl.u32 %v420, 7
        %v422 = vsub.s32 %v419, %v421
        %v423 = vrot.slane %v416, %v422
        %v424 = vcombine.low %v412, %v413
        %v426 = vunpack.c.l.s4 1983009808
        %v427 = vunpack.c.0.s8 %v426
        %v428 = vlaneseq
        %v429 = vshrl.u32 %v428, 7
        %v430 = vsub.s32 %v427, %v429
        %v431 = vrot.slane %v424, %v430
        %v432 = vcombine.low %v404, %v411
        %v434 = vunpack.c.l.s4 1983009808
        %v435 = vunpack.c.0.s8 %v434
        %v436 = vlaneseq
        %v437 = vshrl.u32 %v436, 7
        %v438 = vsub.s32 %v435, %v437
        %v439 = vrot.slane %v432, %v438
        %v440 = vcombine.low %v414, %v415
        %v442 = vunpack.c.l.s4 1983009808
        %v443 = vunpack.c.0.s8 %v442
        %v444 = vlaneseq
        %v445 = vshrl.u32 %v444, 7
        %v446 = vsub.s32 %v443, %v445
        %v447 = vrot.slane %v440, %v446
        %v448 = vcombine.low %v423, %v431
        %v449 = vcombine.high %v423, %v431
        %v451 = vunpack.c.l.s4 1934713408
        %v452 = vunpack.c.0.s8 %v451
        %v453 = vlaneseq
        %v454 = vshrl.u32 %v453, 7
        %v455 = vsub.s32 %v452, %v454
        %v456 = vrot.slane %v448, %v455
        %v458 = vunpack.c.l.s4 1934713408
        %v459 = vunpack.c.0.s8 %v458
        %v460 = vlaneseq
        %v461 = vshrl.u32 %v460, 7
        %v462 = vsub.s32 %v459, %v461
        %v463 = vrot.slane %v449, %v462
        %v464 = vcombine.low %v439, %v447
        %v465 = vcombine.high %v439, %v447
        %v467 = vunpack.c.l.s4 1934713408
        %v468 = vunpack.c.0.s8 %v467
        %v469 = vlaneseq
        %v470 = vshrl.u32 %v469, 7
        %v471 = vsub.s32 %v468, %v470
        %v472 = vrot.slane %v464, %v471
        %v474 = vunpack.c.l.s4 1934713408
        %v475 = vunpack.c.0.s8 %v474
        %v476 = vlaneseq
        %v477 = vshrl.u32 %v476, 7
        %v478 = vsub.s32 %v475, %v477
        %v479 = vrot.slane %v465, %v478
        %v480 = vcombine.low %v456, %v472
        %v481 = vcombine.high %v456, %v472
        %v482 = vcombine.low %v463, %v479
        %v483 = vcombine.high %v463, %v479
        %v484 = vpack.c.bf16 %v480, %v480
        %v485 = vpack.c.bf16 %v481, %v481
        %v486 = vpack.c.bf16 %v482, %v482
        %v487 = vpack.c.bf16 %v483, %v483
        %488 = vrot.lane.b32.xlu0 %v333, 96
        %v489 = vpop.permute.xlu0 %488
        %490 = vrot.lane.b32.xlu0 %v340, 96
        %v491 = vpop.permute.xlu0 %490
        %492 = vrot.lane.b32.xlu0 %v343, 96
        %v493 = vpop.permute.xlu0 %492
        %494 = vrot.lane.b32.xlu0 %v346, 96
        %v495 = vpop.permute.xlu0 %494
        %v500 = vcombine.low %v489, %v493
        %v501 = vcombine.high %v489, %v493
        %v503 = vunpack.c.l.s4 1983009808
        %v504 = vunpack.c.0.s8 %v503
        %v505 = vlaneseq
        %v506 = vshrl.u32 %v505, 7
        %v507 = vsub.s32 %v504, %v506
        %v508 = vrot.slane %v500, %v507
        %v510 = vunpack.c.l.s4 1983009808
        %v511 = vunpack.c.0.s8 %v510
        %v512 = vlaneseq
        %v513 = vshrl.u32 %v512, 7
        %v514 = vsub.s32 %v511, %v513
        %v515 = vrot.slane %v501, %v514
        %v516 = vcombine.low %v491, %v495
        %v517 = vcombine.high %v491, %v495
        %v519 = vunpack.c.l.s4 1983009808
        %v520 = vunpack.c.0.s8 %v519
        %v521 = vlaneseq
        %v522 = vshrl.u32 %v521, 7
        %v523 = vsub.s32 %v520, %v522
        %v524 = vrot.slane %v516, %v523
        %v526 = vunpack.c.l.s4 1983009808
        %v527 = vunpack.c.0.s8 %v526
        %v528 = vlaneseq
        %v529 = vshrl.u32 %v528, 7
        %v530 = vsub.s32 %v527, %v529
        %v531 = vrot.slane %v517, %v530
        %v532 = vcombine.low %v508, %v524
        %v533 = vcombine.high %v508, %v524
        %v535 = vunpack.c.l.s4 1934713408
        %v536 = vunpack.c.0.s8 %v535
        %v537 = vlaneseq
        %v538 = vshrl.u32 %v537, 7
        %v539 = vsub.s32 %v536, %v538
        %v540 = vrot.slane %v532, %v539
        %v542 = vunpack.c.l.s4 1934713408
        %v543 = vunpack.c.0.s8 %v542
        %v544 = vlaneseq
        %v545 = vshrl.u32 %v544, 7
        %v546 = vsub.s32 %v543, %v545
        %v547 = vrot.slane %v533, %v546
        %v548 = vcombine.low %v515, %v531
        %v549 = vcombine.high %v515, %v531
        %v551 = vunpack.c.l.s4 1934713408
        %v552 = vunpack.c.0.s8 %v551
        %v553 = vlaneseq
        %v554 = vshrl.u32 %v553, 7
        %v555 = vsub.s32 %v552, %v554
        %v556 = vrot.slane %v548, %v555
        %v558 = vunpack.c.l.s4 1934713408
        %v559 = vunpack.c.0.s8 %v558
        %v560 = vlaneseq
        %v561 = vshrl.u32 %v560, 7
        %v562 = vsub.s32 %v559, %v561
        %v563 = vrot.slane %v549, %v562
        %v564 = vcombine.high %v540, 0.0
        %v565 = vcombine.high %v547, 0.0
        %v566 = vcombine.high %v556, 0.0
        %v567 = vcombine.high %v563, 0.0
        %v568 = vcombine.low %v540, %v547
        %v570 = vunpack.c.l.s4 1983009808
        %v571 = vunpack.c.0.s8 %v570
        %v572 = vlaneseq
        %v573 = vshrl.u32 %v572, 7
        %v574 = vsub.s32 %v571, %v573
        %v575 = vrot.slane %v568, %v574
        %v576 = vcombine.low %v564, %v565
        %v578 = vunpack.c.l.s4 1983009808
        %v579 = vunpack.c.0.s8 %v578
        %v580 = vlaneseq
        %v581 = vshrl.u32 %v580, 7
        %v582 = vsub.s32 %v579, %v581
        %v583 = vrot.slane %v576, %v582
        %v584 = vcombine.low %v556, %v563
        %v586 = vunpack.c.l.s4 1983009808
        %v587 = vunpack.c.0.s8 %v586
        %v588 = vlaneseq
        %v589 = vshrl.u32 %v588, 7
        %v590 = vsub.s32 %v587, %v589
        %v591 = vrot.slane %v584, %v590
        %v592 = vcombine.low %v566, %v567
        %v594 = vunpack.c.l.s4 1983009808
        %v595 = vunpack.c.0.s8 %v594
        %v596 = vlaneseq
        %v597 = vshrl.u32 %v596, 7
        %v598 = vsub.s32 %v595, %v597
        %v599 = vrot.slane %v592, %v598
        %v600 = vcombine.low %v575, %v583
        %v601 = vcombine.high %v575, %v583
        %v603 = vunpack.c.l.s4 1934713408
        %v604 = vunpack.c.0.s8 %v603
        %v605 = vlaneseq
        %v606 = vshrl.u32 %v605, 7
        %v607 = vsub.s32 %v604, %v606
        %v608 = vrot.slane %v600, %v607
        %v610 = vunpack.c.l.s4 1934713408
        %v611 = vunpack.c.0.s8 %v610
        %v612 = vlaneseq
        %v613 = vshrl.u32 %v612, 7
        %v614 = vsub.s32 %v611, %v613
        %v615 = vrot.slane %v601, %v614
        %v616 = vcombine.low %v591, %v599
        %v617 = vcombine.high %v591, %v599
        %v619 = vunpack.c.l.s4 1934713408
        %v620 = vunpack.c.0.s8 %v619
        %v621 = vlaneseq
        %v622 = vshrl.u32 %v621, 7
        %v623 = vsub.s32 %v620, %v622
        %v624 = vrot.slane %v616, %v623
        %v626 = vunpack.c.l.s4 1934713408
        %v627 = vunpack.c.0.s8 %v626
        %v628 = vlaneseq
        %v629 = vshrl.u32 %v628, 7
        %v630 = vsub.s32 %v627, %v629
        %v631 = vrot.slane %v617, %v630
        %v632 = vcombine.low %v608, %v624
        %v633 = vcombine.high %v608, %v624
        %v634 = vcombine.low %v615, %v631
        %v635 = vcombine.high %v615, %v631
        %v636 = vpack.c.bf16 %v632, %v632
        %v637 = vpack.c.bf16 %v633, %v633
        %v638 = vpack.c.bf16 %v634, %v634
        %v639 = vpack.c.bf16 %v635, %v635
        %640 = vrot.lane.b32.xlu0 %v333, 64
        %v641 = vpop.permute.xlu0 %640
        %642 = vrot.lane.b32.xlu0 %v340, 64
        %v643 = vpop.permute.xlu0 %642
        %644 = vrot.lane.b32.xlu0 %v343, 64
        %v645 = vpop.permute.xlu0 %644
        %646 = vrot.lane.b32.xlu0 %v346, 64
        %v647 = vpop.permute.xlu0 %646
        %v652 = vcombine.low %v641, %v645
        %v653 = vcombine.high %v641, %v645
        %v655 = vunpack.c.l.s4 1983009808
        %v656 = vunpack.c.0.s8 %v655
        %v657 = vlaneseq
        %v658 = vshrl.u32 %v657, 7
        %v659 = vsub.s32 %v656, %v658
        %v660 = vrot.slane %v652, %v659
        %v662 = vunpack.c.l.s4 1983009808
        %v663 = vunpack.c.0.s8 %v662
        %v664 = vlaneseq
        %v665 = vshrl.u32 %v664, 7
        %v666 = vsub.s32 %v663, %v665
        %v667 = vrot.slane %v653, %v666
        %v668 = vcombine.low %v643, %v647
        %v669 = vcombine.high %v643, %v647
        %v671 = vunpack.c.l.s4 1983009808
        %v672 = vunpack.c.0.s8 %v671
        %v673 = vlaneseq
        %v674 = vshrl.u32 %v673, 7
        %v675 = vsub.s32 %v672, %v674
        %v676 = vrot.slane %v668, %v675
        %v678 = vunpack.c.l.s4 1983009808
        %v679 = vunpack.c.0.s8 %v678
        %v680 = vlaneseq
        %v681 = vshrl.u32 %v680, 7
        %v682 = vsub.s32 %v679, %v681
        %v683 = vrot.slane %v669, %v682
        %v684 = vcombine.low %v660, %v676
        %v685 = vcombine.high %v660, %v676
        %v687 = vunpack.c.l.s4 1934713408
        %v688 = vunpack.c.0.s8 %v687
        %v689 = vlaneseq
        %v690 = vshrl.u32 %v689, 7
        %v691 = vsub.s32 %v688, %v690
        %v692 = vrot.slane %v684, %v691
        %v694 = vunpack.c.l.s4 1934713408
        %v695 = vunpack.c.0.s8 %v694
        %v696 = vlaneseq
        %v697 = vshrl.u32 %v696, 7
        %v698 = vsub.s32 %v695, %v697
        %v699 = vrot.slane %v685, %v698
        %v700 = vcombine.low %v667, %v683
        %v701 = vcombine.high %v667, %v683
        %v703 = vunpack.c.l.s4 1934713408
        %v704 = vunpack.c.0.s8 %v703
        %v705 = vlaneseq
        %v706 = vshrl.u32 %v705, 7
        %v707 = vsub.s32 %v704, %v706
        %v708 = vrot.slane %v700, %v707
        %v710 = vunpack.c.l.s4 1934713408
        %v711 = vunpack.c.0.s8 %v710
        %v712 = vlaneseq
        %v713 = vshrl.u32 %v712, 7
        %v714 = vsub.s32 %v711, %v713
        %v715 = vrot.slane %v701, %v714
        %v716 = vcombine.high %v692, 0.0
        %v717 = vcombine.high %v699, 0.0
        %v718 = vcombine.high %v708, 0.0
        %v719 = vcombine.high %v715, 0.0
        %v720 = vcombine.low %v692, %v699
        %v722 = vunpack.c.l.s4 1983009808
        %v723 = vunpack.c.0.s8 %v722
        %v724 = vlaneseq
        %v725 = vshrl.u32 %v724, 7
        %v726 = vsub.s32 %v723, %v725
        %v727 = vrot.slane %v720, %v726
        %v728 = vcombine.low %v716, %v717
        %v730 = vunpack.c.l.s4 1983009808
        %v731 = vunpack.c.0.s8 %v730
        %v732 = vlaneseq
        %v733 = vshrl.u32 %v732, 7
        %v734 = vsub.s32 %v731, %v733
        %v735 = vrot.slane %v728, %v734
        %v736 = vcombine.low %v708, %v715
        %v738 = vunpack.c.l.s4 1983009808
        %v739 = vunpack.c.0.s8 %v738
        %v740 = vlaneseq
        %v741 = vshrl.u32 %v740, 7
        %v742 = vsub.s32 %v739, %v741
        %v743 = vrot.slane %v736, %v742
        %v744 = vcombine.low %v718, %v719
        %v746 = vunpack.c.l.s4 1983009808
        %v747 = vunpack.c.0.s8 %v746
        %v748 = vlaneseq
        %v749 = vshrl.u32 %v748, 7
        %v750 = vsub.s32 %v747, %v749
        %v751 = vrot.slane %v744, %v750
        %v752 = vcombine.low %v727, %v735
        %v753 = vcombine.high %v727, %v735
        %v755 = vunpack.c.l.s4 1934713408
        %v756 = vunpack.c.0.s8 %v755
        %v757 = vlaneseq
        %v758 = vshrl.u32 %v757, 7
        %v759 = vsub.s32 %v756, %v758
        %v760 = vrot.slane %v752, %v759
        %v762 = vunpack.c.l.s4 1934713408
        %v763 = vunpack.c.0.s8 %v762
        %v764 = vlaneseq
        %v765 = vshrl.u32 %v764, 7
        %v766 = vsub.s32 %v763, %v765
        %v767 = vrot.slane %v753, %v766
        %v768 = vcombine.low %v743, %v751
        %v769 = vcombine.high %v743, %v751
        %v771 = vunpack.c.l.s4 1934713408
        %v772 = vunpack.c.0.s8 %v771
        %v773 = vlaneseq
        %v774 = vshrl.u32 %v773, 7
        %v775 = vsub.s32 %v772, %v774
        %v776 = vrot.slane %v768, %v775
        %v778 = vunpack.c.l.s4 1934713408
        %v779 = vunpack.c.0.s8 %v778
        %v780 = vlaneseq
        %v781 = vshrl.u32 %v780, 7
        %v782 = vsub.s32 %v779, %v781
        %v783 = vrot.slane %v769, %v782
        %v784 = vcombine.low %v760, %v776
        %v785 = vcombine.high %v760, %v776
        %v786 = vcombine.low %v767, %v783
        %v787 = vcombine.high %v767, %v783
        %v788 = vpack.c.bf16 %v784, %v784
        %v789 = vpack.c.bf16 %v785, %v785
        %v790 = vpack.c.bf16 %v786, %v786
        %v791 = vpack.c.bf16 %v787, %v787
        %vm792 = vcmask 64512
        %v794 = vsel %vm792, %v484, 0
        %v797 = vsel %vm792, %v636, 0
        %799 = vmatprep.subr.bf16.mxu0 0
        %800 = vmatpush1.bf16.xpose.msra.mxu0 %v797
        %801 = vmatprep.subr.bf16.mxu0 0
        %802 = vmatpush1.bf16.xpose.msra.mxu0 0
        %803 = vmatprep.subr.bf16.mxu0 0
        %804 = vmatpush1.bf16.xpose.msra.mxu0 0
        %805 = vmatprep.subr.bf16.mxu0 0
        %806 = vmatpush1.bf16.xpose.msra.mxu0 0
        %807 = vmatprep.subr.bf16.mxu0 0
        %808 = vmatpush1.bf16.xpose.msra.mxu0 0
        %809 = vmatprep.subr.bf16.mxu0 0
        %810 = vmatpush1.bf16.xpose.msra.mxu0 0
        %811 = vmatprep.subr.bf16.mxu0 0
        %812 = vmatpush1.bf16.xpose.msra.mxu0 0
        %813 = vmatprep.subr.bf16.mxu0 0
        %814 = vmatpush1.bf16.xpose.msra.mxu0 0
        %815 = vmatprep.subr.bf16.mxu0 0
        %816 = vmatpush1.bf16.xpose.msra.mxu0 0
        %817 = vmatprep.subr.bf16.mxu0 0
        %818 = vmatpush1.bf16.xpose.msra.mxu0 0
        %819 = vmatprep.subr.bf16.mxu0 0
        %820 = vmatpush1.bf16.xpose.msra.mxu0 0
        %821 = vmatprep.subr.bf16.mxu0 0
        %822 = vmatpush1.bf16.xpose.msra.mxu0 0
        %823 = vmatprep.subr.bf16.mxu0 0
        %824 = vmatpush1.bf16.xpose.msra.mxu0 0
        %825 = vmatprep.subr.bf16.mxu0 0
        %826 = vmatpush1.bf16.xpose.msra.mxu0 0
        %827 = vmatprep.subr.bf16.mxu0 0
        %828 = vmatpush1.bf16.xpose.msra.mxu0 0
        %829 = vmatprep.subr.bf16.mxu0 0
        %830 = vmatpush1.bf16.xpose.msra.mxu0 0
        %831 = vmatprep.mubr.bf16.mxu0 0
        %832 = vmatmul.mubr.bf16.gmra.mrb[0].mxu0 %v794
        %v833 = vpop.f32.mrb[0].mxu0
        %v834 = vadd.f32 0.0, %v833
        %v835 = vpop.f32.mrb[0].mxu0
        %v836 = vpop.f32.mrb[0].mxu0
        %v837 = vpop.f32.mrb[0].mxu0
        %838 = vdwg.mxu0
        %v840 = vsel %vm792, %v485, 0
        %v843 = vsel %vm792, %v637, 0
        %845 = vmatprep.subr.bf16.mxu0 0
        %846 = vmatpush1.bf16.xpose.msra.mxu0 %v843
        %847 = vmatprep.subr.bf16.mxu0 0
        %848 = vmatpush1.bf16.xpose.msra.mxu0 0
        %849 = vmatprep.subr.bf16.mxu0 0
        %850 = vmatpush1.bf16.xpose.msra.mxu0 0
        %851 = vmatprep.subr.bf16.mxu0 0
        %852 = vmatpush1.bf16.xpose.msra.mxu0 0
        %853 = vmatprep.subr.bf16.mxu0 0
        %854 = vmatpush1.bf16.xpose.msra.mxu0 0
        %855 = vmatprep.subr.bf16.mxu0 0
        %856 = vmatpush1.bf16.xpose.msra.mxu0 0
        %857 = vmatprep.subr.bf16.mxu0 0
        %858 = vmatpush1.bf16.xpose.msra.mxu0 0
        %859 = vmatprep.subr.bf16.mxu0 0
        %860 = vmatpush1.bf16.xpose.msra.mxu0 0
        %861 = vmatprep.subr.bf16.mxu0 0
        %862 = vmatpush1.bf16.xpose.msra.mxu0 0
        %863 = vmatprep.subr.bf16.mxu0 0
        %864 = vmatpush1.bf16.xpose.msra.mxu0 0
        %865 = vmatprep.subr.bf16.mxu0 0
        %866 = vmatpush1.bf16.xpose.msra.mxu0 0
        %867 = vmatprep.subr.bf16.mxu0 0
        %868 = vmatpush1.bf16.xpose.msra.mxu0 0
        %869 = vmatprep.subr.bf16.mxu0 0
        %870 = vmatpush1.bf16.xpose.msra.mxu0 0
        %871 = vmatprep.subr.bf16.mxu0 0
        %872 = vmatpush1.bf16.xpose.msra.mxu0 0
        %873 = vmatprep.subr.bf16.mxu0 0
        %874 = vmatpush1.bf16.xpose.msra.mxu0 0
        %875 = vmatprep.subr.bf16.mxu0 0
        %876 = vmatpush1.bf16.xpose.msra.mxu0 0
        %877 = vmatprep.mubr.bf16.mxu0 0
        %878 = vmatmul.mubr.bf16.gmra.mrb[0].mxu0 %v840
        %v879 = vpop.f32.mrb[0].mxu0
        %v880 = vadd.f32 0.0, %v879
        %v881 = vpop.f32.mrb[0].mxu0
        %v882 = vpop.f32.mrb[0].mxu0
        %v883 = vpop.f32.mrb[0].mxu0
        %884 = vdwg.mxu0
        %v886 = vsel %vm792, %v486, 0
        %v889 = vsel %vm792, %v638, 0
        %891 = vmatprep.subr.bf16.mxu0 0
        %892 = vmatpush1.bf16.xpose.msra.mxu0 %v889
        %893 = vmatprep.subr.bf16.mxu0 0
        %894 = vmatpush1.bf16.xpose.msra.mxu0 0
        %895 = vmatprep.subr.bf16.mxu0 0
        %896 = vmatpush1.bf16.xpose.msra.mxu0 0
        %897 = vmatprep.subr.bf16.mxu0 0
        %898 = vmatpush1.bf16.xpose.msra.mxu0 0
        %899 = vmatprep.subr.bf16.mxu0 0
        %900 = vmatpush1.bf16.xpose.msra.mxu0 0
        %901 = vmatprep.subr.bf16.mxu0 0
        %902 = vmatpush1.bf16.xpose.msra.mxu0 0
        %903 = vmatprep.subr.bf16.mxu0 0
        %904 = vmatpush1.bf16.xpose.msra.mxu0 0
        %905 = vmatprep.subr.bf16.mxu0 0
        %906 = vmatpush1.bf16.xpose.msra.mxu0 0
        %907 = vmatprep.subr.bf16.mxu0 0
        %908 = vmatpush1.bf16.xpose.msra.mxu0 0
        %909 = vmatprep.subr.bf16.mxu0 0
        %910 = vmatpush1.bf16.xpose.msra.mxu0 0
        %911 = vmatprep.subr.bf16.mxu0 0
        %912 = vmatpush1.bf16.xpose.msra.mxu0 0
        %913 = vmatprep.subr.bf16.mxu0 0
        %914 = vmatpush1.bf16.xpose.msra.mxu0 0
        %915 = vmatprep.subr.bf16.mxu0 0
        %916 = vmatpush1.bf16.xpose.msra.mxu0 0
        %917 = vmatprep.subr.bf16.mxu0 0
        %918 = vmatpush1.bf16.xpose.msra.mxu0 0
        %919 = vmatprep.subr.bf16.mxu0 0
        %920 = vmatpush1.bf16.xpose.msra.mxu0 0
        %921 = vmatprep.subr.bf16.mxu0 0
        %922 = vmatpush1.bf16.xpose.msra.mxu0 0
        %923 = vmatprep.mubr.bf16.mxu0 0
        %924 = vmatmul.mubr.bf16.gmra.mrb[0].mxu0 %v886
        %v925 = vpop.f32.mrb[0].mxu0
        %v926 = vadd.f32 0.0, %v925
        %v927 = vpop.f32.mrb[0].mxu0
        %v928 = vpop.f32.mrb[0].mxu0
        %v929 = vpop.f32.mrb[0].mxu0
        %930 = vdwg.mxu0
        %v932 = vsel %vm792, %v487, 0
        %v935 = vsel %vm792, %v639, 0
        %937 = vmatprep.subr.bf16.mxu0 0
        %938 = vmatpush1.bf16.xpose.msra.mxu0 %v935
        %939 = vmatprep.subr.bf16.mxu0 0
        %940 = vmatpush1.bf16.xpose.msra.mxu0 0
        %941 = vmatprep.subr.bf16.mxu0 0
        %942 = vmatpush1.bf16.xpose.msra.mxu0 0
        %943 = vmatprep.subr.bf16.mxu0 0
        %944 = vmatpush1.bf16.xpose.msra.mxu0 0
        %945 = vmatprep.subr.bf16.mxu0 0
        %946 = vmatpush1.bf16.xpose.msra.mxu0 0
        %947 = vmatprep.subr.bf16.mxu0 0
        %948 = vmatpush1.bf16.xpose.msra.mxu0 0
        %949 = vmatprep.subr.bf16.mxu0 0
        %950 = vmatpush1.bf16.xpose.msra.mxu0 0
        %951 = vmatprep.subr.bf16.mxu0 0
        %952 = vmatpush1.bf16.xpose.msra.mxu0 0
        %953 = vmatprep.subr.bf16.mxu0 0
        %954 = vmatpush1.bf16.xpose.msra.mxu0 0
        %955 = vmatprep.subr.bf16.mxu0 0
        %956 = vmatpush1.bf16.xpose.msra.mxu0 0
        %957 = vmatprep.subr.bf16.mxu0 0
        %958 = vmatpush1.bf16.xpose.msra.mxu0 0
        %959 = vmatprep.subr.bf16.mxu0 0
        %960 = vmatpush1.bf16.xpose.msra.mxu0 0
        %961 = vmatprep.subr.bf16.mxu0 0
        %962 = vmatpush1.bf16.xpose.msra.mxu0 0
        %963 = vmatprep.subr.bf16.mxu0 0
        %964 = vmatpush1.bf16.xpose.msra.mxu0 0
        %965 = vmatprep.subr.bf16.mxu0 0
        %966 = vmatpush1.bf16.xpose.msra.mxu0 0
        %967 = vmatprep.subr.bf16.mxu0 0
        %968 = vmatpush1.bf16.xpose.msra.mxu0 0
        %969 = vmatprep.mubr.bf16.mxu0 0
        %970 = vmatmul.mubr.bf16.gmra.mrb[0].mxu0 %v932
        %v971 = vpop.f32.mrb[0].mxu0
        %v972 = vadd.f32 0.0, %v971
        %v973 = vpop.f32.mrb[0].mxu0
        %v974 = vpop.f32.mrb[0].mxu0
        %v975 = vpop.f32.mrb[0].mxu0
        %976 = vdwg.mxu0
        %v977 = vsel %vm792, %v834, -inf
        %978 = vmax.xlane.f32.xlu0 %v977
        %v979 = vpop.xlane.xlu0 %978
        %v980 = vsel %vm792, %v880, -inf
        %981 = vmax.xlane.f32.xlu0 %v980
        %v982 = vpop.xlane.xlu0 %981
        %v983 = vsel %vm792, %v926, -inf
        %984 = vmax.xlane.f32.xlu0 %v983
        %v985 = vpop.xlane.xlu0 %984
        %v986 = vsel %vm792, %v972, -inf
        %987 = vmax.xlane.f32.xlu0 %v986
        %v988 = vpop.xlane.xlu0 %987
        %v989 = vsub.f32 %v834, %v979
        %v990 = vsub.f32 %v880, %v982
        %v991 = vsub.f32 %v926, %v985
        %v992 = vsub.f32 %v972, %v988
        %v993 = vmul.f32 %v989, 1.442695
        %v994 = vpow.pop %v993
        %v995 = vmul.f32 %v990, 1.442695
        %v996 = vpow.pop %v995
        %v997 = vmul.f32 %v991, 1.442695
        %v998 = vpow.pop %v997
        %v999 = vmul.f32 %v992, 1.442695
        %v1000 = vpow.pop %v999
        %v1001 = vsel %vm792, %v994, 0.0
        %1002 = vadd.xlane.f32.xlu0 %v1001
        %v1003 = vpop.xlane.xlu0 %1002
        %v1004 = vsel %vm792, %v996, 0.0
        %1005 = vadd.xlane.f32.xlu0 %v1004
        %v1006 = vpop.xlane.xlu0 %1005
        %v1007 = vsel %vm792, %v998, 0.0
        %1008 = vadd.xlane.f32.xlu0 %v1007
        %v1009 = vpop.xlane.xlu0 %1008
        %v1010 = vsel %vm792, %v1000, 0.0
        %1011 = vadd.xlane.f32.xlu0 %v1010
        %v1012 = vpop.xlane.xlu0 %1011
        %v1013 = vpack.c.bf16 %v994, %v994
        %v1014 = vpack.c.bf16 %v996, %v996
        %v1015 = vpack.c.bf16 %v998, %v998
        %v1016 = vpack.c.bf16 %v1000, %v1000
        %v1018 = vsel %vm792, %v1013, 0
        %vm1020 = vcmask 1043456
        %v1022 = vsel %vm1020, %v788, 0
        %1024 = vmatprep.subr.bf16.mxu0 0
        %1025 = vmatpush1.bf16.msra.mxu0 %v1022
        %1026 = vmatprep.subr.bf16.mxu0 0
        %1027 = vmatpush1.bf16.msra.mxu0 0
        %1028 = vmatprep.subr.bf16.mxu0 0
        %1029 = vmatpush1.bf16.msra.mxu0 0
        %1030 = vmatprep.subr.bf16.mxu0 0
        %1031 = vmatpush1.bf16.msra.mxu0 0
        %1032 = vmatprep.subr.bf16.mxu0 0
        %1033 = vmatpush1.bf16.msra.mxu0 0
        %1034 = vmatprep.subr.bf16.mxu0 0
        %1035 = vmatpush1.bf16.msra.mxu0 0
        %1036 = vmatprep.subr.bf16.mxu0 0
        %1037 = vmatpush1.bf16.msra.mxu0 0
        %1038 = vmatprep.subr.bf16.mxu0 0
        %1039 = vmatpush1.bf16.msra.mxu0 0
        %1040 = vmatprep.subr.bf16.mxu0 0
        %1041 = vmatpush1.bf16.msra.mxu0 0
        %1042 = vmatprep.subr.bf16.mxu0 0
        %1043 = vmatpush1.bf16.msra.mxu0 0
        %1044 = vmatprep.subr.bf16.mxu0 0
        %1045 = vmatpush1.bf16.msra.mxu0 0
        %1046 = vmatprep.subr.bf16.mxu0 0
        %1047 = vmatpush1.bf16.msra.mxu0 0
        %1048 = vmatprep.subr.bf16.mxu0 0
        %1049 = vmatpush1.bf16.msra.mxu0 0
        %1050 = vmatprep.subr.bf16.mxu0 0
        %1051 = vmatpush1.bf16.msra.mxu0 0
        %1052 = vmatprep.subr.bf16.mxu0 0
        %1053 = vmatpush1.bf16.msra.mxu0 0
        %1054 = vmatprep.subr.bf16.mxu0 0
        %1055 = vmatpush1.bf16.msra.mxu0 0
        %1056 = vmatprep.mubr.bf16.mxu0 0
        %1057 = vmatmul.mubr.bf16.gmra.mrb[0].mxu0 %v1018
        %v1058 = vpop.f32.mrb[0].mxu0
        %v1059 = vadd.f32 0.0, %v1058
        %v1060 = vpop.f32.mrb[0].mxu0
        %v1061 = vpop.f32.mrb[0].mxu0
        %v1062 = vpop.f32.mrb[0].mxu0
        %1063 = vdwg.mxu0
        %v1065 = vsel %vm792, %v1014, 0
        %v1068 = vsel %vm1020, %v789, 0
        %1070 = vmatprep.subr.bf16.mxu0 0
        %1071 = vmatpush1.bf16.msra.mxu0 %v1068
        %1072 = vmatprep.subr.bf16.mxu0 0
        %1073 = vmatpush1.bf16.msra.mxu0 0
        %1074 = vmatprep.subr.bf16.mxu0 0
        %1075 = vmatpush1.bf16.msra.mxu0 0
        %1076 = vmatprep.subr.bf16.mxu0 0
        %1077 = vmatpush1.bf16.msra.mxu0 0
        %1078 = vmatprep.subr.bf16.mxu0 0
        %1079 = vmatpush1.bf16.msra.mxu0 0
        %1080 = vmatprep.subr.bf16.mxu0 0
        %1081 = vmatpush1.bf16.msra.mxu0 0
        %1082 = vmatprep.subr.bf16.mxu0 0
        %1083 = vmatpush1.bf16.msra.mxu0 0
        %1084 = vmatprep.subr.bf16.mxu0 0
        %1085 = vmatpush1.bf16.msra.mxu0 0
        %1086 = vmatprep.subr.bf16.mxu0 0
        %1087 = vmatpush1.bf16.msra.mxu0 0
        %1088 = vmatprep.subr.bf16.mxu0 0
        %1089 = vmatpush1.bf16.msra.mxu0 0
        %1090 = vmatprep.subr.bf16.mxu0 0
        %1091 = vmatpush1.bf16.msra.mxu0 0
        %1092 = vmatprep.subr.bf16.mxu0 0
        %1093 = vmatpush1.bf16.msra.mxu0 0
        %1094 = vmatprep.subr.bf16.mxu0 0
        %1095 = vmatpush1.bf16.msra.mxu0 0
        %1096 = vmatprep.subr.bf16.mxu0 0
        %1097 = vmatpush1.bf16.msra.mxu0 0
        %1098 = vmatprep.subr.bf16.mxu0 0
        %1099 = vmatpush1.bf16.msra.mxu0 0
        %1100 = vmatprep.subr.bf16.mxu0 0
        %1101 = vmatpush1.bf16.msra.mxu0 0
        %1102 = vmatprep.mubr.bf16.mxu0 0
        %1103 = vmatmul.mubr.bf16.gmra.mrb[0].mxu0 %v1065
        %v1104 = vpop.f32.mrb[0].mxu0
        %v1105 = vadd.f32 0.0, %v1104
        %v1106 = vpop.f32.mrb[0].mxu0
        %v1107 = vpop.f32.mrb[0].mxu0
        %v1108 = vpop.f32.mrb[0].mxu0
        %1109 = vdwg.mxu0
        %v1111 = vsel %vm792, %v1015, 0
        %v1114 = vsel %vm1020, %v790, 0
        %1116 = vmatprep.subr.bf16.mxu0 0
        %1117 = vmatpush1.bf16.msra.mxu0 %v1114
        %1118 = vmatprep.subr.bf16.mxu0 0
        %1119 = vmatpush1.bf16.msra.mxu0 0
        %1120 = vmatprep.subr.bf16.mxu0 0
        %1121 = vmatpush1.bf16.msra.mxu0 0
        %1122 = vmatprep.subr.bf16.mxu0 0
        %1123 = vmatpush1.bf16.msra.mxu0 0
        %1124 = vmatprep.subr.bf16.mxu0 0
        %1125 = vmatpush1.bf16.msra.mxu0 0
        %1126 = vmatprep.subr.bf16.mxu0 0
        %1127 = vmatpush1.bf16.msra.mxu0 0
        %1128 = vmatprep.subr.bf16.mxu0 0
        %1129 = vmatpush1.bf16.msra.mxu0 0
        %1130 = vmatprep.subr.bf16.mxu0 0
        %1131 = vmatpush1.bf16.msra.mxu0 0
        %1132 = vmatprep.subr.bf16.mxu0 0
        %1133 = vmatpush1.bf16.msra.mxu0 0
        %1134 = vmatprep.subr.bf16.mxu0 0
        %1135 = vmatpush1.bf16.msra.mxu0 0
        %1136 = vmatprep.subr.bf16.mxu0 0
        %1137 = vmatpush1.bf16.msra.mxu0 0
        %1138 = vmatprep.subr.bf16.mxu0 0
        %1139 = vmatpush1.bf16.msra.mxu0 0
        %1140 = vmatprep.subr.bf16.mxu0 0
        %1141 = vmatpush1.bf16.msra.mxu0 0
        %1142 = vmatprep.subr.bf16.mxu0 0
        %1143 = vmatpush1.bf16.msra.mxu0 0
        %1144 = vmatprep.subr.bf16.mxu0 0
        %1145 = vmatpush1.bf16.msra.mxu0 0
        %1146 = vmatprep.subr.bf16.mxu0 0
        %1147 = vmatpush1.bf16.msra.mxu0 0
        %1148 = vmatprep.mubr.bf16.mxu0 0
        %1149 = vmatmul.mubr.bf16.gmra.mrb[0].mxu0 %v1111
        %v1150 = vpop.f32.mrb[0].mxu0
        %v1151 = vadd.f32 0.0, %v1150
        %v1152 = vpop.f32.mrb[0].mxu0
        %v1153 = vpop.f32.mrb[0].mxu0
        %v1154 = vpop.f32.mrb[0].mxu0
        %1155 = vdwg.mxu0
        %v1157 = vsel %vm792, %v1016, 0
        %v1160 = vsel %vm1020, %v791, 0
        %1162 = vmatprep.subr.bf16.mxu0 0
        %1163 = vmatpush1.bf16.msra.mxu0 %v1160
        %1164 = vmatprep.subr.bf16.mxu0 0
        %1165 = vmatpush1.bf16.msra.mxu0 0
        %1166 = vmatprep.subr.bf16.mxu0 0
        %1167 = vmatpush1.bf16.msra.mxu0 0
        %1168 = vmatprep.subr.bf16.mxu0 0
        %1169 = vmatpush1.bf16.msra.mxu0 0
        %1170 = vmatprep.subr.bf16.mxu0 0
        %1171 = vmatpush1.bf16.msra.mxu0 0
        %1172 = vmatprep.subr.bf16.mxu0 0
        %1173 = vmatpush1.bf16.msra.mxu0 0
        %1174 = vmatprep.subr.bf16.mxu0 0
        %1175 = vmatpush1.bf16.msra.mxu0 0
        %1176 = vmatprep.subr.bf16.mxu0 0
        %1177 = vmatpush1.bf16.msra.mxu0 0
        %1178 = vmatprep.subr.bf16.mxu0 0
        %1179 = vmatpush1.bf16.msra.mxu0 0
        %1180 = vmatprep.subr.bf16.mxu0 0
        %1181 = vmatpush1.bf16.msra.mxu0 0
        %1182 = vmatprep.subr.bf16.mxu0 0
        %1183 = vmatpush1.bf16.msra.mxu0 0
        %1184 = vmatprep.subr.bf16.mxu0 0
        %1185 = vmatpush1.bf16.msra.mxu0 0
        %1186 = vmatprep.subr.bf16.mxu0 0
        %1187 = vmatpush1.bf16.msra.mxu0 0
        %1188 = vmatprep.subr.bf16.mxu0 0
        %1189 = vmatpush1.bf16.msra.mxu0 0
        %1190 = vmatprep.subr.bf16.mxu0 0
        %1191 = vmatpush1.bf16.msra.mxu0 0
        %1192 = vmatprep.subr.bf16.mxu0 0
        %1193 = vmatpush1.bf16.msra.mxu0 0
        %1194 = vmatprep.mubr.bf16.mxu0 0
        %1195 = vmatmul.mubr.bf16.gmra.mrb[0].mxu0 %v1157
        %v1196 = vpop.f32.mrb[0].mxu0
        %v1197 = vadd.f32 0.0, %v1196
        %v1198 = vpop.f32.mrb[0].mxu0
        %v1199 = vpop.f32.mrb[0].mxu0
        %v1200 = vpop.f32.mrb[0].mxu0
        %1201 = vdwg.mxu0
        %v1202 = vrcp.pop %v1003
        %v1203 = vrcp.pop %v1006
        %v1204 = vrcp.pop %v1009
        %v1205 = vrcp.pop %v1012
        %v1206 = vmul.f32 %v1059, %v1202
        %v1207 = vmul.f32 %v1105, %v1203
        %v1208 = vmul.f32 %v1151, %v1204
        %v1209 = vmul.f32 %v1197, %v1205
        %v1210 = vpack.c.bf16 %v1206, %v1206
        %v1211 = vpack.c.bf16 %v1207, %v1207
        %v1212 = vpack.c.bf16 %v1208, %v1208
        %v1213 = vpack.c.bf16 %v1209, %v1209
        %v1214 = vld [vmem:[#allocation7] sm:$0xf]
        %v1215 = vld [vmem:[#allocation7 + $0x4] sm:$0xf]
        %v1216 = vld [vmem:[#allocation7 + $0x8] sm:$0xf]
        %v1217 = vld [vmem:[#allocation7 + $0xc] sm:$0xf]
        %v1219 = vsel %vm792, %v1210, 0
        %v1222 = vsel %vm1020, %v1214, 0
        %1224 = vmatprep.subr.bf16.mxu0 0
        %1225 = vmatpush1.bf16.msra.mxu0 %v1222
        %1226 = vmatprep.subr.bf16.mxu0 0
        %1227 = vmatpush1.bf16.msra.mxu0 0
        %1228 = vmatprep.subr.bf16.mxu0 0
        %1229 = vmatpush1.bf16.msra.mxu0 0
        %1230 = vmatprep.subr.bf16.mxu0 0
        %1231 = vmatpush1.bf16.msra.mxu0 0
        %1232 = vmatprep.subr.bf16.mxu0 0
        %1233 = vmatpush1.bf16.msra.mxu0 0
        %1234 = vmatprep.subr.bf16.mxu0 0
        %1235 = vmatpush1.bf16.msra.mxu0 0
        %1236 = vmatprep.subr.bf16.mxu0 0
        %1237 = vmatpush1.bf16.msra.mxu0 0
        %1238 = vmatprep.subr.bf16.mxu0 0
        %1239 = vmatpush1.bf16.msra.mxu0 0
        %1240 = vmatprep.subr.bf16.mxu0 0
        %1241 = vmatpush1.bf16.msra.mxu0 0
        %1242 = vmatprep.subr.bf16.mxu0 0
        %1243 = vmatpush1.bf16.msra.mxu0 0
        %1244 = vmatprep.subr.bf16.mxu0 0
        %1245 = vmatpush1.bf16.msra.mxu0 0
        %1246 = vmatprep.subr.bf16.mxu0 0
        %1247 = vmatpush1.bf16.msra.mxu0 0
        %1248 = vmatprep.subr.bf16.mxu0 0
        %1249 = vmatpush1.bf16.msra.mxu0 0
        %1250 = vmatprep.subr.bf16.mxu0 0
        %1251 = vmatpush1.bf16.msra.mxu0 0
        %1252 = vmatprep.subr.bf16.mxu0 0
        %1253 = vmatpush1.bf16.msra.mxu0 0
        %1254 = vmatprep.subr.bf16.mxu0 0
        %1255 = vmatpush1.bf16.msra.mxu0 0
        %1256 = vmatprep.mubr.bf16.mxu0 0
        %1257 = vmatmul.mubr.bf16.gmra.mrb[0].mxu0 %v1219
        %v1258 = vpop.f32.mrb[0].mxu0
        %v1259 = vadd.f32 0.0, %v1258
        %v1260 = vpop.f32.mrb[0].mxu0
        %v1261 = vpop.f32.mrb[0].mxu0
        %v1262 = vpop.f32.mrb[0].mxu0
        %1263 = vdwg.mxu0
        %v1265 = vsel %vm792, %v1211, 0
        %v1268 = vsel %vm1020, %v1215, 0
        %1270 = vmatprep.subr.bf16.mxu0 0
        %1271 = vmatpush1.bf16.msra.mxu0 %v1268
        %1272 = vmatprep.subr.bf16.mxu0 0
        %1273 = vmatpush1.bf16.msra.mxu0 0
        %1274 = vmatprep.subr.bf16.mxu0 0
        %1275 = vmatpush1.bf16.msra.mxu0 0
        %1276 = vmatprep.subr.bf16.mxu0 0
        %1277 = vmatpush1.bf16.msra.mxu0 0
        %1278 = vmatprep.subr.bf16.mxu0 0
        %1279 = vmatpush1.bf16.msra.mxu0 0
        %1280 = vmatprep.subr.bf16.mxu0 0
        %1281 = vmatpush1.bf16.msra.mxu0 0
        %1282 = vmatprep.subr.bf16.mxu0 0
        %1283 = vmatpush1.bf16.msra.mxu0 0
        %1284 = vmatprep.subr.bf16.mxu0 0
        %1285 = vmatpush1.bf16.msra.mxu0 0
        %1286 = vmatprep.subr.bf16.mxu0 0
        %1287 = vmatpush1.bf16.msra.mxu0 0
        %1288 = vmatprep.subr.bf16.mxu0 0
        %1289 = vmatpush1.bf16.msra.mxu0 0
        %1290 = vmatprep.subr.bf16.mxu0 0
        %1291 = vmatpush1.bf16.msra.mxu0 0
        %1292 = vmatprep.subr.bf16.mxu0 0
        %1293 = vmatpush1.bf16.msra.mxu0 0
        %1294 = vmatprep.subr.bf16.mxu0 0
        %1295 = vmatpush1.bf16.msra.mxu0 0
        %1296 = vmatprep.subr.bf16.mxu0 0
        %1297 = vmatpush1.bf16.msra.mxu0 0
        %1298 = vmatprep.subr.bf16.mxu0 0
        %1299 = vmatpush1.bf16.msra.mxu0 0
        %1300 = vmatprep.subr.bf16.mxu0 0
        %1301 = vmatpush1.bf16.msra.mxu0 0
        %1302 = vmatprep.mubr.bf16.mxu0 0
        %1303 = vmatmul.mubr.bf16.gmra.mrb[0].mxu0 %v1265
        %v1304 = vpop.f32.mrb[0].mxu0
        %v1305 = vadd.f32 0.0, %v1304
        %v1306 = vpop.f32.mrb[0].mxu0
        %v1307 = vpop.f32.mrb[0].mxu0
        %v1308 = vpop.f32.mrb[0].mxu0
        %1309 = vdwg.mxu0
        %v1311 = vsel %vm792, %v1212, 0
        %v1314 = vsel %vm1020, %v1216, 0
        %1316 = vmatprep.subr.bf16.mxu0 0
        %1317 = vmatpush1.bf16.msra.mxu0 %v1314
        %1318 = vmatprep.subr.bf16.mxu0 0
        %1319 = vmatpush1.bf16.msra.mxu0 0
        %1320 = vmatprep.subr.bf16.mxu0 0
        %1321 = vmatpush1.bf16.msra.mxu0 0
        %1322 = vmatprep.subr.bf16.mxu0 0
        %1323 = vmatpush1.bf16.msra.mxu0 0
        %1324 = vmatprep.subr.bf16.mxu0 0
        %1325 = vmatpush1.bf16.msra.mxu0 0
        %1326 = vmatprep.subr.bf16.mxu0 0
        %1327 = vmatpush1.bf16.msra.mxu0 0
        %1328 = vmatprep.subr.bf16.mxu0 0
        %1329 = vmatpush1.bf16.msra.mxu0 0
        %1330 = vmatprep.subr.bf16.mxu0 0
        %1331 = vmatpush1.bf16.msra.mxu0 0
        %1332 = vmatprep.subr.bf16.mxu0 0
        %1333 = vmatpush1.bf16.msra.mxu0 0
        %1334 = vmatprep.subr.bf16.mxu0 0
        %1335 = vmatpush1.bf16.msra.mxu0 0
        %1336 = vmatprep.subr.bf16.mxu0 0
        %1337 = vmatpush1.bf16.msra.mxu0 0
        %1338 = vmatprep.subr.bf16.mxu0 0
        %1339 = vmatpush1.bf16.msra.mxu0 0
        %1340 = vmatprep.subr.bf16.mxu0 0
        %1341 = vmatpush1.bf16.msra.mxu0 0
        %1342 = vmatprep.subr.bf16.mxu0 0
        %1343 = vmatpush1.bf16.msra.mxu0 0
        %1344 = vmatprep.subr.bf16.mxu0 0
        %1345 = vmatpush1.bf16.msra.mxu0 0
        %1346 = vmatprep.subr.bf16.mxu0 0
        %1347 = vmatpush1.bf16.msra.mxu0 0
        %1348 = vmatprep.mubr.bf16.mxu0 0
        %1349 = vmatmul.mubr.bf16.gmra.mrb[0].mxu0 %v1311
        %v1350 = vpop.f32.mrb[0].mxu0
        %v1351 = vadd.f32 0.0, %v1350
        %v1352 = vpop.f32.mrb[0].mxu0
        %v1353 = vpop.f32.mrb[0].mxu0
        %v1354 = vpop.f32.mrb[0].mxu0
        %1355 = vdwg.mxu0
        %v1357 = vsel %vm792, %v1213, 0
        %v1360 = vsel %vm1020, %v1217, 0
        %1362 = vmatprep.subr.bf16.mxu0 0
        %1363 = vmatpush1.bf16.msra.mxu0 %v1360
        %1364 = vmatprep.subr.bf16.mxu0 0
        %1365 = vmatpush1.bf16.msra.mxu0 0
        %1366 = vmatprep.subr.bf16.mxu0 0
        %1367 = vmatpush1.bf16.msra.mxu0 0
        %1368 = vmatprep.subr.bf16.mxu0 0
        %1369 = vmatpush1.bf16.msra.mxu0 0
        %1370 = vmatprep.subr.bf16.mxu0 0
        %1371 = vmatpush1.bf16.msra.mxu0 0
        %1372 = vmatprep.subr.bf16.mxu0 0
        %1373 = vmatpush1.bf16.msra.mxu0 0
        %1374 = vmatprep.subr.bf16.mxu0 0
        %1375 = vmatpush1.bf16.msra.mxu0 0
        %1376 = vmatprep.subr.bf16.mxu0 0
        %1377 = vmatpush1.bf16.msra.mxu0 0
        %1378 = vmatprep.subr.bf16.mxu0 0
        %1379 = vmatpush1.bf16.msra.mxu0 0
        %1380 = vmatprep.subr.bf16.mxu0 0
        %1381 = vmatpush1.bf16.msra.mxu0 0
        %1382 = vmatprep.subr.bf16.mxu0 0
        %1383 = vmatpush1.bf16.msra.mxu0 0
        %1384 = vmatprep.subr.bf16.mxu0 0
        %1385 = vmatpush1.bf16.msra.mxu0 0
        %1386 = vmatprep.subr.bf16.mxu0 0
        %1387 = vmatpush1.bf16.msra.mxu0 0
        %1388 = vmatprep.subr.bf16.mxu0 0
        %1389 = vmatpush1.bf16.msra.mxu0 0
        %1390 = vmatprep.subr.bf16.mxu0 0
        %1391 = vmatpush1.bf16.msra.mxu0 0
        %1392 = vmatprep.subr.bf16.mxu0 0
        %1393 = vmatpush1.bf16.msra.mxu0 0
        %1394 = vmatprep.mubr.bf16.mxu0 0
        %1395 = vmatmul.mubr.bf16.gmra.mrb[0].mxu0 %v1357
        %v1396 = vpop.f32.mrb[0].mxu0
        %v1397 = vadd.f32 0.0, %v1396
        %v1398 = vpop.f32.mrb[0].mxu0
        %v1399 = vpop.f32.mrb[0].mxu0
        %v1400 = vpop.f32.mrb[0].mxu0
        %1401 = vdwg.mxu0
        %v1402 = vsel %vm294, %v1259, 0.0
        %v1403 = vsel %vm294, %v1305, 0.0
        %v1404 = vadd.f32 %v1402, %v1403
        %v1405 = vsel %vm294, %v1351, 0.0
        %v1406 = vadd.f32 %v1404, %v1405
        %v1407 = vsel %vm294, %v1397, 0.0
        %v1408 = vadd.f32 %v1406, %v1407
        %v1409 = vld [vmem:[%s4] sm:$0x1]
        %v1411 = vlaneseq
        %v1412 = vshrl.u32 %v1411, 7
        %v1413 = vsub.s32 0, %v1412
        %v1414 = vrot.slane %v1409, %v1413
        %v1416 = vadd.f32 %v1408, %v1414
        %1417 = vst.msk [vmem:[%s268] sm:$0xff] %vm294, %v1416
        %s1418 = sand.u32 %s141, 1
        %s1419 = scalar_lea.sflag [#allocation4], %s1418
        %s1420 = sand.u32 %s141, 1
        %s1421 = smul.addr %s1420, 8
        %s1422 = scalar_lea.vmem [#allocation8], %s1421
        // Predicated region
        $region53: #{tpu_custom_call.1} parent=39 // pred_check
          %p1423 = pneg %p151
        $region54: #{tpu_custom_call.1} parent=39 // pred_check_branch
          %1425 = sbr.rel (%p1423) target = $region56
        $region55: #{tpu_custom_call.1} parent=39 // pred_region
          %s1427 = ssub.s32 128, 128
          %1428 = vsyncadd %s1419, %s1427
          %s1429 = smul.addr %s23, 128
          %s1430 = scalar_lea.hbm %s5, %s1429
          %s1432 = sshll.u32 %s1422, 4
          %s1433 = int_to_ptr.vmem [resolvable:$true] %s1432
          %1435 = dma.vmem_to_hbm [thread:$0]  %s1433, 128, %s1430, %s1419
        $region56: #{tpu_custom_call.1} parent=39 // pred_fallthru
          _
      $region40: #{tpu_custom_call.1} parent=5 // pred_fallthru
        _
      %p1436 = scmp.le.s32.totalorder 2, %s18
      // Predicated region
      $region57: #{tpu_custom_call.1} parent=5 // pred_check
        %p1437 = pneg %p1436
      $region58: #{tpu_custom_call.1} parent=5 // pred_check_branch
        %1439 = sbr.rel (%p1437) target = $region60
      $region59: #{tpu_custom_call.1} parent=5 // pred_region
        %s1440 = ssub.s32 %s18, 2
        // Predicated region
        $region61: #{tpu_custom_call.1} parent=59 // pred_check
          %p1441 = pneg %p157
        $region62: #{tpu_custom_call.1} parent=59 // pred_check_branch
          %1443 = sbr.rel (%p1441) target = $region64
        $region63: #{tpu_custom_call.1} parent=59 // pred_region
          %s1444 = sand.u32 %s142, 1
          %s1445 = scalar_lea.sflag [#allocation4], %s1444
          %s1446 = sand.u32 %s142, 1
          %s1447 = smul.addr %s1446, 8
          %s1448 = scalar_lea.vmem [#allocation8], %s1447
          %1449 = dma.done %s1445, 128
        $region64: #{tpu_custom_call.1} parent=59 // pred_fallthru
          _
      $region60: #{tpu_custom_call.1} parent=5 // pred_fallthru
        _
    $region6: #{tpu_custom_call.1} parent=1 // loop_footer
      %s22 = sadd.s32 1, %s18
    $region7: #{tpu_custom_call.1} parent=1 // loop_footer_branch
      %17 = sbr.rel target = $region3
    $region8: #{tpu_custom_call.1} parent=1 // loop_exit
      _
    %1450 = vsyncpa [#allocation3], 1
    %s1451 = scalar_lea.sflag [#allocation3], 1
    %1452 = vsyncpa %s1451, 1
    %1453 = vsyncpa [#allocation6], 1
    %1454 = vsyncpa [#allocation4], 1
    %s1455 = scalar_lea.sflag [#allocation4], 1
    %1456 = vsyncpa %s1455, 1

</llo_original>
